<compile_context>
chip_gen: v7x
topology: tpu7x:2x2x1
jax: 0.10.0
libtpu: 0.0.40
codegen_flags: <defaults>
</compile_context>

<pallas_src>
import functools

import jax
import jax.numpy as jnp
from jax.experimental import pallas as pl
from jax.experimental.pallas import tpu as pltpu


# ---------------------------------------------------------------------------
# helpers
# ---------------------------------------------------------------------------
def _round_up(n, m):
    return ((n + m - 1) // m) * m


def _choose_tile(n, max_t, mult):
    """Largest t <= max_t with n % t == 0 and t % mult == 0 (n multiple of mult)."""
    assert n % mult == 0, (n, mult)
    t = min(n, max_t)
    t -= t % mult
    while t > mult and n % t:
        t -= mult
    return t


def _pack_gru_weight(w, H, Hp, in_dim, in_dim_p):
    """torch (3H, in_dim) -> transposed, gate-padded (in_dim_p, 3*Hp)."""
    out = jnp.zeros((in_dim_p, 3 * Hp), jnp.float32)
    for g in range(3):
        out = out.at[:in_dim, g * Hp:g * Hp + H].set(w[g * H:(g + 1) * H, :].T)
    return out


def _pack_gru_bias(b, H, Hp):
    out = jnp.zeros((3 * Hp,), jnp.float32)
    for g in range(3):
        out = out.at[g * Hp:g * Hp + H].set(b[g * H:(g + 1) * H])
    return out[None, :]


# ---------------------------------------------------------------------------
# shared tiled matmul + bias kernel  (input projection AND h2o)
# ---------------------------------------------------------------------------
def matmul_bias_kernel(x_ref, w_ref, b_ref, out_ref):
    out_ref[...] = (
        jnp.dot(x_ref[...], w_ref[...], preferred_element_type=jnp.float32)
        + b_ref[...]
    ).astype(out_ref.dtype)


def matmul_bias(x, w, b, *, tm_max=256, tn_max=512):
    M, K = x.shape
    Kw, N = w.shape
    assert K == Kw
    tm = _choose_tile(M, tm_max, 8)
    tn = _choose_tile(N, tn_max, 128)
    cost = pl.CostEstimate(
        flops=2 * M * K * N,
        transcendentals=0,
        bytes_accessed=4 * (M * K + K * N + M * N),
    )
    return pl.pallas_call(
        matmul_bias_kernel,
        out_shape=jax.ShapeDtypeStruct((M, N), jnp.float32),
        grid_spec=pltpu.PrefetchScalarGridSpec(
            num_scalar_prefetch=0,
            grid=(M // tm, N // tn),
            in_specs=[
                pl.BlockSpec((tm, K), lambda i, j: (i, 0)),
                pl.BlockSpec((K, tn), lambda i, j: (0, j)),
                pl.BlockSpec((1, tn), lambda i, j: (0, j)),
            ],
            out_specs=pl.BlockSpec((tm, tn), lambda i, j: (i, j)),
        ),
        compiler_params=pltpu.CompilerParams(
            dimension_semantics=("parallel", "parallel"),
            vmem_limit_bytes=32 * 1024 * 1024,
        ),
        cost_estimate=cost,
    )(x, w, b)


# ---------------------------------------------------------------------------
# GRU recurrence kernel: full time loop inside, only h @ W_hh on the serial path
# ---------------------------------------------------------------------------
def gru_recurrence_kernel(gi_ref, whh_ref, bhh_ref, out_ref, hist_ref):
    """gi_ref:  (S, tb, 3Hp)  precomputed x@W_ih^T + b_ih, time-major
       whh_ref: (Hp, 3Hp)     W_hh^T, gate slots lane-aligned
       bhh_ref: (1, 3Hp)
       out_ref: (L, tb, Hp)   hidden states for the trailing L timesteps
       hist_ref:(S, tb, Hp)   VMEM scratch holding every timestep's hidden state
    """
    S, tb, G3 = gi_ref.shape
    Hp = G3 // 3
    L = out_ref.shape[0]

    whh = whh_ref[...]
    bhh = bhh_ref[...]

    def step(t, h):
        gi = gi_ref[t]                                              # (tb, 3Hp)
        gh = jnp.dot(h, whh, preferred_element_type=jnp.float32) + bhh
        r = jax.nn.sigmoid(gi[:, 0 * Hp:1 * Hp] + gh[:, 0 * Hp:1 * Hp])
        z = jax.nn.sigmoid(gi[:, 1 * Hp:2 * Hp] + gh[:, 1 * Hp:2 * Hp])
        n = jnp.tanh(gi[:, 2 * Hp:3 * Hp] + r * gh[:, 2 * Hp:3 * Hp])
        h_new = (1.0 - z) * n + z * h
        hist_ref[t] = h_new
        return h_new

    h0 = jnp.zeros((tb, Hp), jnp.float32)                           # zero init hidden
    jax.lax.fori_loop(0, S, step, h0, unroll=True)

    out_ref[...] = hist_ref[pl.ds(S - L, L)].astype(out_ref.dtype)  # trailing L only


def gru_recurrence(gi_all, w_hh_p, b_hh_p, *, L, tb):
    S, Bp, G3 = gi_all.shape
    Hp = G3 // 3
    assert Bp % tb == 0
    cost = pl.CostEstimate(
        flops=2 * S * Bp * Hp * 3 * Hp + 12 * S * Bp * Hp,
        transcendentals=3 * S * Bp * Hp,
        bytes_accessed=4 * (S * Bp * 3 * Hp + Hp * 3 * Hp + L * Bp * Hp),
    )
    return pl.pallas_call(
        gru_recurrence_kernel,
        out_shape=jax.ShapeDtypeStruct((L, Bp, Hp), jnp.float32),
        grid_spec=pltpu.PrefetchScalarGridSpec(
            num_scalar_prefetch=0,
            grid=(Bp // tb,),
            in_specs=[
                pl.BlockSpec((S, tb, 3 * Hp), lambda b: (0, b, 0)),
                pl.BlockSpec((Hp, 3 * Hp), lambda b: (0, 0)),
                pl.BlockSpec((1, 3 * Hp), lambda b: (0, 0)),
            ],
            out_specs=pl.BlockSpec((L, tb, Hp), lambda b: (0, b, 0)),
            scratch_shapes=[pltpu.VMEM((S, tb, Hp), jnp.float32)],
        ),
        compiler_params=pltpu.CompilerParams(
            dimension_semantics=("parallel",),     # batch tiles independent; time is inside
            vmem_limit_bytes=32 * 1024 * 1024,
        ),
        cost_estimate=cost,
    )(gi_all, w_hh_p, b_hh_p)


# ---------------------------------------------------------------------------
# full forward
# ---------------------------------------------------------------------------
def gru4rec_forward(input_seqs, poss_item_seqs, params, *, padding_value=0):
    emb_table = params["emb"]                         # (V, E)
    B, S = input_seqs.shape
    V, E = emb_table.shape
    H = params["w_hh"].shape[1]
    L = poss_item_seqs.shape[1]
    assert L <= S

    # lane/sublane-aligned padded sizes
    Hp = _round_up(H, 128)
    Vp = _round_up(V, 128)
    Bp = _round_up(B, 8)
    tb = _choose_tile(Bp, 128, 8)

    # --- pack weights (gate order r,z,n; each gate in its own Hp-wide slot) ---
    w_ih_p = _pack_gru_weight(params["w_ih"], H, Hp, E, E)      # (E, 3Hp)
    w_hh_p = _pack_gru_weight(params["w_hh"], H, Hp, H, Hp)     # (Hp, 3Hp)
    b_ih_p = _pack_gru_bias(params["b_ih"], H, Hp)              # (1, 3Hp)
    b_hh_p = _pack_gru_bias(params["b_hh"], H, Hp)              # (1, 3Hp)
    w_h2o_p = jnp.zeros((Hp, Vp), jnp.float32).at[:H, :V].set(params["w_h2o"].T)
    b_h2o_p = jnp.zeros((Vp,), jnp.float32).at[:V].set(params["b_h2o"])[None, :]

    # --- batch pad with the padding item (zero embedding row) ---
    if Bp != B:
        pad = jnp.full((Bp - B, S), padding_value, dtype=input_seqs.dtype)
        seqs_p = jnp.concatenate([input_seqs, pad], axis=0)
    else:
        seqs_p = input_seqs

    # Embedding lookup (padding row of table is zero); input dropout p=0 == identity.
    embedded = jnp.take(emb_table, seqs_p, axis=0)              # (Bp, S, E)

    # --- input projection, hoisted out of the recurrence (one big MXU matmul) ---
    x_tm = jnp.transpose(embedded, (1, 0, 2)).reshape(S * Bp, E)     # time-major rows
    gi_all = matmul_bias(x_tm, w_ih_p, b_ih_p)                        # (S*Bp, 3Hp)
    gi_all = gi_all.reshape(S, Bp, 3 * Hp)

    # --- recurrence: whole time loop inside one kernel, batch-tiled grid ---
    gru_out_tm = gru_recurrence(gi_all, w_hh_p, b_hh_p, L=L, tb=tb)   # (L, Bp, Hp)
    gru_out = jnp.transpose(gru_out_tm, (1, 0, 2)).reshape(Bp * L, Hp)

    # --- h2o only on the trailing L timesteps, tiled, lane-dense Vp output ---
    scores = matmul_bias(gru_out, w_h2o_p, b_h2o_p)                   # (Bp*L, Vp)
    scores = scores.reshape(Bp, L, Vp)[:B, :, :V]                     # (B, L, V)

    # TODO(synk): torch.gather requires index.ndim == input.ndim; the module's
    # docstring passes a 4-D index into a 3-D tensor -- we follow the docstring
    # by flattening the last two index dims for the gather along dim=-1.
    Bq, Lq, O, N = poss_item_seqs.shape
    idx = poss_item_seqs.reshape(Bq, Lq, O * N)
    gathered = jnp.take_along_axis(scores, idx, axis=-1)
    return gathered.reshape(Bq, Lq, O, N)


# ---------------------------------------------------------------------------
# parameter init (torch-layout weights)
# ---------------------------------------------------------------------------
def init_params(key, num_items, emb_size, hidden_size, padding_value=0):
    V = num_items + 1
    k = jax.random.split(key, 7)
    s = 1.0 / jnp.sqrt(hidden_size)

    emb = jax.random.normal(k[0], (V, emb_size), jnp.float32)
    emb = emb.at[padding_value].set(0.0)        # padding_idx row is zero

    return {
        "emb": emb,
        "w_ih": jax.random.uniform(k[1], (3 * hidden_size, emb_size), jnp.float32, -s, s),
        "w_hh": jax.random.uniform(k[2], (3 * hidden_size, hidden_size), jnp.float32, -s, s),
        "b_ih": jax.random.uniform(k[3], (3 * hidden_size,), jnp.float32, -s, s),
        "b_hh": jax.random.uniform(k[4], (3 * hidden_size,), jnp.float32, -s, s),
        "w_h2o": jax.random.uniform(k[5], (V, hidden_size), jnp.float32, -s, s),
        "b_h2o": jax.random.uniform(k[6], (V,), jnp.float32, -s, s),
    }


if __name__ == "__main__":
    num_items = 63          # vocabulary V = 64
    emb_size = 16
    hidden_size = 32
    B, S = 2, 8             # batch, input sequence length
    L, O, N = 4, 2, 3       # trailing window, output_seq_len, candidates per step

    key = jax.random.PRNGKey(0)
    kp, ki, kq = jax.random.split(key, 3)

    params = init_params(kp, num_items, emb_size, hidden_size, padding_value=0)
    input_seqs = jax.random.randint(ki, (B, S), 0, num_items + 1, dtype=jnp.int32)
    poss_item_seqs = jax.random.randint(kq, (B, L, O, N), 0, num_items + 1,
                                        dtype=jnp.int32)

    fwd = jax.jit(functools.partial(gru4rec_forward, padding_value=0))
    out = fwd(input_seqs, poss_item_seqs, params)
    jax.block_until_ready(out)
    assert out.shape == (B, L, O, N), out.shape
    print("KERNEL_OK")
</pallas_src>

<mosaic_0001>
module attributes {stable_mosaic.version = 11 : i64} {
  func.func @matmul_bias_kernel(%arg0: i32, %arg1: i32, %arg2: memref<64x16xf32, #tpu.memory_space<vmem>>, %arg3: memref<16x384xf32, #tpu.memory_space<vmem>>, %arg4: memref<1x384xf32, #tpu.memory_space<vmem>>, %arg5: memref<64x384xf32, #tpu.memory_space<vmem>>) attributes {dimension_semantics = [#tpu.dimension_semantics<parallel>, #tpu.dimension_semantics<parallel>], iteration_bounds = array<i64: 1, 1>, scalar_prefetch = 0 : i64, scratch_operands = 0 : i64, tpu.core_type = #tpu.core_type<tc>, window_params = [{transform_indices = @transform_0, window_bounds = array<i64: 64, 16>}, {transform_indices = @transform_1, window_bounds = array<i64: 16, 384>}, {transform_indices = @transform_2, window_bounds = array<i64: 1, 384>}, {transform_indices = @transform_3, window_bounds = array<i64: 64, 384>}]} {
    %c0 = arith.constant 0 : index
    %c0_0 = arith.constant 0 : index
    %0 = vector.load %arg2[%c0, %c0_0] : memref<64x16xf32, #tpu.memory_space<vmem>>, vector<64x16xf32>
    %c0_1 = arith.constant 0 : index
    %c0_2 = arith.constant 0 : index
    %1 = vector.load %arg3[%c0_1, %c0_2] : memref<16x384xf32, #tpu.memory_space<vmem>>, vector<16x384xf32>
    %cst = arith.constant dense<0.000000e+00> : vector<64x384xf32>
    %2 = tpu.matmul %0, %1, %cst {dimension_numbers = #tpu.dot_dimension_numbers<[1], [0], [0], [1], [0, 0, 1, 1], [], []>} : vector<64x16xf32>, vector<16x384xf32>, vector<64x384xf32> -> vector<64x384xf32>
    %c0_3 = arith.constant 0 : index
    %c0_4 = arith.constant 0 : index
    %3 = vector.load %arg4[%c0_3, %c0_4] : memref<1x384xf32, #tpu.memory_space<vmem>>, vector<1x384xf32>
    %4 = vector.broadcast %3 : vector<1x384xf32> to vector<64x384xf32>
    %5 = arith.addf %2, %4 : vector<64x384xf32>
    %c0_5 = arith.constant 0 : index
    %c0_6 = arith.constant 0 : index
    %6 = vector.load %arg5[%c0_5, %c0_6] : memref<64x384xf32, #tpu.memory_space<vmem>>, vector<64x384xf32>
    tpu.vector_store %arg5[%c0_5, %c0_6], %5 {strides = array<i32>} : memref<64x384xf32, #tpu.memory_space<vmem>>, vector<64x384xf32>,
    return
  }
  func.func @transform_0(%arg0: i32, %arg1: i32) -> (i32, i32) {
    %c0_i32 = arith.constant 0 : i32
    %c0_i32_0 = arith.constant 0 : i32
    return %arg0, %c0_i32 : i32, i32
  }
  func.func @transform_1(%arg0: i32, %arg1: i32) -> (i32, i32) {
    %c0_i32 = arith.constant 0 : i32
    %c0_i32_0 = arith.constant 0 : i32
    return %c0_i32, %arg1 : i32, i32
  }
  func.func @transform_2(%arg0: i32, %arg1: i32) -> (i32, i32) {
    %c0_i32 = arith.constant 0 : i32
    %c0_i32_0 = arith.constant 0 : i32
    return %c0_i32, %arg1 : i32, i32
  }
  func.func @transform_3(%arg0: i32, %arg1: i32) -> (i32, i32) {
    %c0_i32 = arith.constant 0 : i32
    return %arg0, %arg1 : i32, i32
  }
}

module attributes {stable_mosaic.version = 11 : i64} {
  func.func @gru_recurrence_kernel(%arg0: i32, %arg1: memref<8x8x384xf32, #tpu.memory_space<vmem>>, %arg2: memref<128x384xf32, #tpu.memory_space<vmem>>, %arg3: memref<1x384xf32, #tpu.memory_space<vmem>>, %arg4: memref<4x8x128xf32, #tpu.memory_space<vmem>>, %arg5: memref<8x8x128xf32, #tpu.memory_space<vmem>>) attributes {dimension_semantics = [#tpu.dimension_semantics<parallel>], iteration_bounds = array<i64: 1>, scalar_prefetch = 0 : i64, scratch_operands = 1 : i64, tpu.core_type = #tpu.core_type<tc>, window_params = [{transform_indices = @transform_0, window_bounds = array<i64: 8, 8, 384>}, {pipeline_mode = #tpu.pipeline_mode<synchronous>, transform_indices = @transform_1, window_bounds = array<i64: 128, 384>}, {pipeline_mode = #tpu.pipeline_mode<synchronous>, transform_indices = @transform_2, window_bounds = array<i64: 1, 384>}, {transform_indices = @transform_3, window_bounds = array<i64: 4, 8, 128>}]} {
    %c0 = arith.constant 0 : index
    %c0_0 = arith.constant 0 : index
    %0 = vector.load %arg2[%c0, %c0_0] : memref<128x384xf32, #tpu.memory_space<vmem>>, vector<128x384xf32>
    %c0_1 = arith.constant 0 : index
    %c0_2 = arith.constant 0 : index
    %1 = vector.load %arg3[%c0_1, %c0_2] : memref<1x384xf32, #tpu.memory_space<vmem>>, vector<1x384xf32>
    %cst = arith.constant 0.000000e+00 : f32
    %2 = vector.broadcast %cst : f32 to vector<8x128xf32>
    %c0_i32 = arith.constant 0 : i32
    %3 = arith.index_cast %c0_i32 : i32 to index
    %c0_3 = arith.constant 0 : index
    %c0_4 = arith.constant 0 : index
    %4 = vector.load %arg1[%3, %c0_3, %c0_4] : memref<8x8x384xf32, #tpu.memory_space<vmem>>, vector<1x8x384xf32>
    %5 = vector.shape_cast %4 : vector<1x8x384xf32> to vector<8x384xf32>
    %cst_5 = arith.constant dense<0.000000e+00> : vector<8x384xf32>
    %6 = tpu.matmul %2, %0, %cst_5 {dimension_numbers = #tpu.dot_dimension_numbers<[1], [0], [0], [1], [0, 0, 1, 1], [], []>} : vector<8x128xf32>, vector<128x384xf32>, vector<8x384xf32> -> vector<8x384xf32>
    %7 = vector.broadcast %1 : vector<1x384xf32> to vector<8x384xf32>
    %8 = arith.addf %6, %7 : vector<8x384xf32>
    %9 = vector.extract_strided_slice %5 {offsets = [0, 0], sizes = [8, 128], strides = [1, 1]} : vector<8x384xf32> to vector<8x128xf32>
    %10 = vector.extract_strided_slice %8 {offsets = [0, 0], sizes = [8, 128], strides = [1, 1]} : vector<8x384xf32> to vector<8x128xf32>
    %11 = arith.addf %9, %10 : vector<8x128xf32>
    %12 = arith.negf %11 : vector<8x128xf32>
    %13 = math.exp %12 : vector<8x128xf32>
    %cst_6 = arith.constant 1.000000e+00 : f32
    %14 = vector.broadcast %cst_6 : f32 to vector<8x128xf32>
    %15 = arith.addf %14, %13 : vector<8x128xf32>
    %16 = arith.divf %14, %15 : vector<8x128xf32>
    %17 = vector.extract_strided_slice %5 {offsets = [0, 128], sizes = [8, 128], strides = [1, 1]} : vector<8x384xf32> to vector<8x128xf32>
    %18 = vector.extract_strided_slice %8 {offsets = [0, 128], sizes = [8, 128], strides = [1, 1]} : vector<8x384xf32> to vector<8x128xf32>
    %19 = arith.addf %17, %18 : vector<8x128xf32>
    %20 = arith.negf %19 : vector<8x128xf32>
    %21 = math.exp %20 : vector<8x128xf32>
    %cst_7 = arith.constant 1.000000e+00 : f32
    %22 = vector.broadcast %cst_7 : f32 to vector<8x128xf32>
    %23 = arith.addf %22, %21 : vector<8x128xf32>
    %24 = arith.divf %22, %23 : vector<8x128xf32>
    %25 = vector.extract_strided_slice %5 {offsets = [0, 256], sizes = [8, 128], strides = [1, 1]} : vector<8x384xf32> to vector<8x128xf32>
    %26 = vector.extract_strided_slice %8 {offsets = [0, 256], sizes = [8, 128], strides = [1, 1]} : vector<8x384xf32> to vector<8x128xf32>
    %27 = arith.mulf %16, %26 : vector<8x128xf32>
    %28 = arith.addf %25, %27 : vector<8x128xf32>
    %29 = math.tanh %28 : vector<8x128xf32>
    %cst_8 = arith.constant 1.000000e+00 : f32
    %30 = vector.broadcast %cst_8 : f32 to vector<8x128xf32>
    %31 = arith.subf %30, %24 : vector<8x128xf32>
    %32 = arith.mulf %31, %29 : vector<8x128xf32>
    %33 = arith.mulf %24, %2 : vector<8x128xf32>
    %34 = arith.addf %32, %33 : vector<8x128xf32>
    %35 = arith.index_cast %c0_i32 : i32 to index
    %c0_9 = arith.constant 0 : index
    %c0_10 = arith.constant 0 : index
    %36 = vector.load %arg5[%35, %c0_9, %c0_10] : memref<8x8x128xf32, #tpu.memory_space<vmem>>, vector<1x8x128xf32>
    %37 = vector.shape_cast %36 : vector<1x8x128xf32> to vector<8x128xf32>
    %38 = vector.shape_cast %34 : vector<8x128xf32> to vector<1x8x128xf32>
    tpu.vector_store %arg5[%35, %c0_9, %c0_10], %38 {strides = array<i32>} : memref<8x8x128xf32, #tpu.memory_space<vmem>>, vector<1x8x128xf32>,
    %c1_i32 = arith.constant 1 : i32
    %39 = arith.index_cast %c1_i32 : i32 to index
    %c0_11 = arith.constant 0 : index
    %c0_12 = arith.constant 0 : index
    %40 = vector.load %arg1[%39, %c0_11, %c0_12] : memref<8x8x384xf32, #tpu.memory_space<vmem>>, vector<1x8x384xf32>
    %41 = vector.shape_cast %40 : vector<1x8x384xf32> to vector<8x384xf32>
    %cst_13 = arith.constant dense<0.000000e+00> : vector<8x384xf32>
    %42 = tpu.matmul %34, %0, %cst_13 {dimension_numbers = #tpu.dot_dimension_numbers<[1], [0], [0], [1], [0, 0, 1, 1], [], []>} : vector<8x128xf32>, vector<128x384xf32>, vector<8x384xf32> -> vector<8x384xf32>
    %43 = vector.broadcast %1 : vector<1x384xf32> to vector<8x384xf32>
    %44 = arith.addf %42, %43 : vector<8x384xf32>
    %45 = vector.extract_strided_slice %41 {offsets = [0, 0], sizes = [8, 128], strides = [1, 1]} : vector<8x384xf32> to vector<8x128xf32>
    %46 = vector.extract_strided_slice %44 {offsets = [0, 0], sizes = [8, 128], strides = [1, 1]} : vector<8x384xf32> to vector<8x128xf32>
    %47 = arith.addf %45, %46 : vector<8x128xf32>
    %48 = arith.negf %47 : vector<8x128xf32>
    %49 = math.exp %48 : vector<8x128xf32>
    %cst_14 = arith.constant 1.000000e+00 : f32
    %50 = vector.broadcast %cst_14 : f32 to vector<8x128xf32>
    %51 = arith.addf %50, %49 : vector<8x128xf32>
    %52 = arith.divf %50, %51 : vector<8x128xf32>
    %53 = vector.extract_strided_slice %41 {offsets = [0, 128], sizes = [8, 128], strides = [1, 1]} : vector<8x384xf32> to vector<8x128xf32>
    %54 = vector.extract_strided_slice %44 {offsets = [0, 128], sizes = [8, 128], strides = [1, 1]} : vector<8x384xf32> to vector<8x128xf32>
    %55 = arith.addf %53, %54 : vector<8x128xf32>
    %56 = arith.negf %55 : vector<8x128xf32>
    %57 = math.exp %56 : vector<8x128xf32>
    %cst_15 = arith.constant 1.000000e+00 : f32
    %58 = vector.broadcast %cst_15 : f32 to vector<8x128xf32>
    %59 = arith.addf %58, %57 : vector<8x128xf32>
    %60 = arith.divf %58, %59 : vector<8x128xf32>
    %61 = vector.extract_strided_slice %41 {offsets = [0, 256], sizes = [8, 128], strides = [1, 1]} : vector<8x384xf32> to vector<8x128xf32>
    %62 = vector.extract_strided_slice %44 {offsets = [0, 256], sizes = [8, 128], strides = [1, 1]} : vector<8x384xf32> to vector<8x128xf32>
    %63 = arith.mulf %52, %62 : vector<8x128xf32>
    %64 = arith.addf %61, %63 : vector<8x128xf32>
    %65 = math.tanh %64 : vector<8x128xf32>
    %cst_16 = arith.constant 1.000000e+00 : f32
    %66 = vector.broadcast %cst_16 : f32 to vector<8x128xf32>
    %67 = arith.subf %66, %60 : vector<8x128xf32>
    %68 = arith.mulf %67, %65 : vector<8x128xf32>
    %69 = arith.mulf %60, %34 : vector<8x128xf32>
    %70 = arith.addf %68, %69 : vector<8x128xf32>
    %71 = arith.index_cast %c1_i32 : i32 to index
    %c0_17 = arith.constant 0 : index
    %c0_18 = arith.constant 0 : index
    %72 = vector.load %arg5[%71, %c0_17, %c0_18] : memref<8x8x128xf32, #tpu.memory_space<vmem>>, vector<1x8x128xf32>
    %73 = vector.shape_cast %72 : vector<1x8x128xf32> to vector<8x128xf32>
    %74 = vector.shape_cast %70 : vector<8x128xf32> to vector<1x8x128xf32>
    tpu.vector_store %arg5[%71, %c0_17, %c0_18], %74 {strides = array<i32>} : memref<8x8x128xf32, #tpu.memory_space<vmem>>, vector<1x8x128xf32>,
    %c2_i32 = arith.constant 2 : i32
    %75 = arith.index_cast %c2_i32 : i32 to index
    %c0_19 = arith.constant 0 : index
    %c0_20 = arith.constant 0 : index
    %76 = vector.load %arg1[%75, %c0_19, %c0_20] : memref<8x8x384xf32, #tpu.memory_space<vmem>>, vector<1x8x384xf32>
    %77 = vector.shape_cast %76 : vector<1x8x384xf32> to vector<8x384xf32>
    %cst_21 = arith.constant dense<0.000000e+00> : vector<8x384xf32>
    %78 = tpu.matmul %70, %0, %cst_21 {dimension_numbers = #tpu.dot_dimension_numbers<[1], [0], [0], [1], [0, 0, 1, 1], [], []>} : vector<8x128xf32>, vector<128x384xf32>, vector<8x384xf32> -> vector<8x384xf32>
    %79 = vector.broadcast %1 : vector<1x384xf32> to vector<8x384xf32>
    %80 = arith.addf %78, %79 : vector<8x384xf32>
    %81 = vector.extract_strided_slice %77 {offsets = [0, 0], sizes = [8, 128], strides = [1, 1]} : vector<8x384xf32> to vector<8x128xf32>
    %82 = vector.extract_strided_slice %80 {offsets = [0, 0], sizes = [8, 128], strides = [1, 1]} : vector<8x384xf32> to vector<8x128xf32>
    %83 = arith.addf %81, %82 : vector<8x128xf32>
    %84 = arith.negf %83 : vector<8x128xf32>
    %85 = math.exp %84 : vector<8x128xf32>
    %cst_22 = arith.constant 1.000000e+00 : f32
    %86 = vector.broadcast %cst_22 : f32 to vector<8x128xf32>
    %87 = arith.addf %86, %85 : vector<8x128xf32>
    %88 = arith.divf %86, %87 : vector<8x128xf32>
    %89 = vector.extract_strided_slice %77 {offsets = [0, 128], sizes = [8, 128], strides = [1, 1]} : vector<8x384xf32> to vector<8x128xf32>
    %90 = vector.extract_strided_slice %80 {offsets = [0, 128], sizes = [8, 128], strides = [1, 1]} : vector<8x384xf32> to vector<8x128xf32>
    %91 = arith.addf %89, %90 : vector<8x128xf32>
    %92 = arith.negf %91 : vector<8x128xf32>
    %93 = math.exp %92 : vector<8x128xf32>
    %cst_23 = arith.constant 1.000000e+00 : f32
    %94 = vector.broadcast %cst_23 : f32 to vector<8x128xf32>
    %95 = arith.addf %94, %93 : vector<8x128xf32>
    %96 = arith.divf %94, %95 : vector<8x128xf32>
    %97 = vector.extract_strided_slice %77 {offsets = [0, 256], sizes = [8, 128], strides = [1, 1]} : vector<8x384xf32> to vector<8x128xf32>
    %98 = vector.extract_strided_slice %80 {offsets = [0, 256], sizes = [8, 128], strides = [1, 1]} : vector<8x384xf32> to vector<8x128xf32>
    %99 = arith.mulf %88, %98 : vector<8x128xf32>
    %100 = arith.addf %97, %99 : vector<8x128xf32>
    %101 = math.tanh %100 : vector<8x128xf32>
    %cst_24 = arith.constant 1.000000e+00 : f32
    %102 = vector.broadcast %cst_24 : f32 to vector<8x128xf32>
    %103 = arith.subf %102, %96 : vector<8x128xf32>
    %104 = arith.mulf %103, %101 : vector<8x128xf32>
    %105 = arith.mulf %96, %70 : vector<8x128xf32>
    %106 = arith.addf %104, %105 : vector<8x128xf32>
    %107 = arith.index_cast %c2_i32 : i32 to index
    %c0_25 = arith.constant 0 : index
    %c0_26 = arith.constant 0 : index
    %108 = vector.load %arg5[%107, %c0_25, %c0_26] : memref<8x8x128xf32, #tpu.memory_space<vmem>>, vector<1x8x128xf32>
    %109 = vector.shape_cast %108 : vector<1x8x128xf32> to vector<8x128xf32>
    %110 = vector.shape_cast %106 : vector<8x128xf32> to vector<1x8x128xf32>
    tpu.vector_store %arg5[%107, %c0_25, %c0_26], %110 {strides = array<i32>} : memref<8x8x128xf32, #tpu.memory_space<vmem>>, vector<1x8x128xf32>,
    %c3_i32 = arith.constant 3 : i32
    %111 = arith.index_cast %c3_i32 : i32 to index
    %c0_27 = arith.constant 0 : index
    %c0_28 = arith.constant 0 : index
    %112 = vector.load %arg1[%111, %c0_27, %c0_28] : memref<8x8x384xf32, #tpu.memory_space<vmem>>, vector<1x8x384xf32>
    %113 = vector.shape_cast %112 : vector<1x8x384xf32> to vector<8x384xf32>
    %cst_29 = arith.constant dense<0.000000e+00> : vector<8x384xf32>
    %114 = tpu.matmul %106, %0, %cst_29 {dimension_numbers = #tpu.dot_dimension_numbers<[1], [0], [0], [1], [0, 0, 1, 1], [], []>} : vector<8x128xf32>, vector<128x384xf32>, vector<8x384xf32> -> vector<8x384xf32>
    %115 = vector.broadcast %1 : vector<1x384xf32> to vector<8x384xf32>
    %116 = arith.addf %114, %115 : vector<8x384xf32>
    %117 = vector.extract_strided_slice %113 {offsets = [0, 0], sizes = [8, 128], strides = [1, 1]} : vector<8x384xf32> to vector<8x128xf32>
    %118 = vector.extract_strided_slice %116 {offsets = [0, 0], sizes = [8, 128], strides = [1, 1]} : vector<8x384xf32> to vector<8x128xf32>
    %119 = arith.addf %117, %118 : vector<8x128xf32>
    %120 = arith.negf %119 : vector<8x128xf32>
    %121 = math.exp %120 : vector<8x128xf32>
    %cst_30 = arith.constant 1.000000e+00 : f32
    %122 = vector.broadcast %cst_30 : f32 to vector<8x128xf32>
    %123 = arith.addf %122, %121 : vector<8x128xf32>
    %124 = arith.divf %122, %123 : vector<8x128xf32>
    %125 = vector.extract_strided_slice %113 {offsets = [0, 128], sizes = [8, 128], strides = [1, 1]} : vector<8x384xf32> to vector<8x128xf32>
    %126 = vector.extract_strided_slice %116 {offsets = [0, 128], sizes = [8, 128], strides = [1, 1]} : vector<8x384xf32> to vector<8x128xf32>
    %127 = arith.addf %125, %126 : vector<8x128xf32>
    %128 = arith.negf %127 : vector<8x128xf32>
    %129 = math.exp %128 : vector<8x128xf32>
    %cst_31 = arith.constant 1.000000e+00 : f32
    %130 = vector.broadcast %cst_31 : f32 to vector<8x128xf32>
    %131 = arith.addf %130, %129 : vector<8x128xf32>
    %132 = arith.divf %130, %131 : vector<8x128xf32>
    %133 = vector.extract_strided_slice %113 {offsets = [0, 256], sizes = [8, 128], strides = [1, 1]} : vector<8x384xf32> to vector<8x128xf32>
    %134 = vector.extract_strided_slice %116 {offsets = [0, 256], sizes = [8, 128], strides = [1, 1]} : vector<8x384xf32> to vector<8x128xf32>
    %135 = arith.mulf %124, %134 : vector<8x128xf32>
    %136 = arith.addf %133, %135 : vector<8x128xf32>
    %137 = math.tanh %136 : vector<8x128xf32>
    %cst_32 = arith.constant 1.000000e+00 : f32
    %138 = vector.broadcast %cst_32 : f32 to vector<8x128xf32>
    %139 = arith.subf %138, %132 : vector<8x128xf32>
    %140 = arith.mulf %139, %137 : vector<8x128xf32>
    %141 = arith.mulf %132, %106 : vector<8x128xf32>
    %142 = arith.addf %140, %141 : vector<8x128xf32>
    %143 = arith.index_cast %c3_i32 : i32 to index
    %c0_33 = arith.constant 0 : index
    %c0_34 = arith.constant 0 : index
    %144 = vector.load %arg5[%143, %c0_33, %c0_34] : memref<8x8x128xf32, #tpu.memory_space<vmem>>, vector<1x8x128xf32>
    %145 = vector.shape_cast %144 : vector<1x8x128xf32> to vector<8x128xf32>
    %146 = vector.shape_cast %142 : vector<8x128xf32> to vector<1x8x128xf32>
    tpu.vector_store %arg5[%143, %c0_33, %c0_34], %146 {strides = array<i32>} : memref<8x8x128xf32, #tpu.memory_space<vmem>>, vector<1x8x128xf32>,
    %c4_i32 = arith.constant 4 : i32
    %147 = arith.index_cast %c4_i32 : i32 to index
    %c0_35 = arith.constant 0 : index
    %c0_36 = arith.constant 0 : index
    %148 = vector.load %arg1[%147, %c0_35, %c0_36] : memref<8x8x384xf32, #tpu.memory_space<vmem>>, vector<1x8x384xf32>
    %149 = vector.shape_cast %148 : vector<1x8x384xf32> to vector<8x384xf32>
    %cst_37 = arith.constant dense<0.000000e+00> : vector<8x384xf32>
    %150 = tpu.matmul %142, %0, %cst_37 {dimension_numbers = #tpu.dot_dimension_numbers<[1], [0], [0], [1], [0, 0, 1, 1], [], []>} : vector<8x128xf32>, vector<128x384xf32>, vector<8x384xf32> -> vector<8x384xf32>
    %151 = vector.broadcast %1 : vector<1x384xf32> to vector<8x384xf32>
    %152 = arith.addf %150, %151 : vector<8x384xf32>
    %153 = vector.extract_strided_slice %149 {offsets = [0, 0], sizes = [8, 128], strides = [1, 1]} : vector<8x384xf32> to vector<8x128xf32>
    %154 = vector.extract_strided_slice %152 {offsets = [0, 0], sizes = [8, 128], strides = [1, 1]} : vector<8x384xf32> to vector<8x128xf32>
    %155 = arith.addf %153, %154 : vector<8x128xf32>
    %156 = arith.negf %155 : vector<8x128xf32>
    %157 = math.exp %156 : vector<8x128xf32>
    %cst_38 = arith.constant 1.000000e+00 : f32
    %158 = vector.broadcast %cst_38 : f32 to vector<8x128xf32>
    %159 = arith.addf %158, %157 : vector<8x128xf32>
    %160 = arith.divf %158, %159 : vector<8x128xf32>
    %161 = vector.extract_strided_slice %149 {offsets = [0, 128], sizes = [8, 128], strides = [1, 1]} : vector<8x384xf32> to vector<8x128xf32>
    %162 = vector.extract_strided_slice %152 {offsets = [0, 128], sizes = [8, 128], strides = [1, 1]} : vector<8x384xf32> to vector<8x128xf32>
    %163 = arith.addf %161, %162 : vector<8x128xf32>
    %164 = arith.negf %163 : vector<8x128xf32>
    %165 = math.exp %164 : vector<8x128xf32>
    %cst_39 = arith.constant 1.000000e+00 : f32
    %166 = vector.broadcast %cst_39 : f32 to vector<8x128xf32>
    %167 = arith.addf %166, %165 : vector<8x128xf32>
    %168 = arith.divf %166, %167 : vector<8x128xf32>
    %169 = vector.extract_strided_slice %149 {offsets = [0, 256], sizes = [8, 128], strides = [1, 1]} : vector<8x384xf32> to vector<8x128xf32>
    %170 = vector.extract_strided_slice %152 {offsets = [0, 256], sizes = [8, 128], strides = [1, 1]} : vector<8x384xf32> to vector<8x128xf32>
    %171 = arith.mulf %160, %170 : vector<8x128xf32>
    %172 = arith.addf %169, %171 : vector<8x128xf32>
    %173 = math.tanh %172 : vector<8x128xf32>
    %cst_40 = arith.constant 1.000000e+00 : f32
    %174 = vector.broadcast %cst_40 : f32 to vector<8x128xf32>
    %175 = arith.subf %174, %168 : vector<8x128xf32>
    %176 = arith.mulf %175, %173 : vector<8x128xf32>
    %177 = arith.mulf %168, %142 : vector<8x128xf32>
    %178 = arith.addf %176, %177 : vector<8x128xf32>
    %179 = arith.index_cast %c4_i32 : i32 to index
    %c0_41 = arith.constant 0 : index
    %c0_42 = arith.constant 0 : index
    %180 = vector.load %arg5[%179, %c0_41, %c0_42] : memref<8x8x128xf32, #tpu.memory_space<vmem>>, vector<1x8x128xf32>
    %181 = vector.shape_cast %180 : vector<1x8x128xf32> to vector<8x128xf32>
    %182 = vector.shape_cast %178 : vector<8x128xf32> to vector<1x8x128xf32>
    tpu.vector_store %arg5[%179, %c0_41, %c0_42], %182 {strides = array<i32>} : memref<8x8x128xf32, #tpu.memory_space<vmem>>, vector<1x8x128xf32>,
    %c5_i32 = arith.constant 5 : i32
    %183 = arith.index_cast %c5_i32 : i32 to index
    %c0_43 = arith.constant 0 : index
    %c0_44 = arith.constant 0 : index
    %184 = vector.load %arg1[%183, %c0_43, %c0_44] : memref<8x8x384xf32, #tpu.memory_space<vmem>>, vector<1x8x384xf32>
    %185 = vector.shape_cast %184 : vector<1x8x384xf32> to vector<8x384xf32>
    %cst_45 = arith.constant dense<0.000000e+00> : vector<8x384xf32>
    %186 = tpu.matmul %178, %0, %cst_45 {dimension_numbers = #tpu.dot_dimension_numbers<[1], [0], [0], [1], [0, 0, 1, 1], [], []>} : vector<8x128xf32>, vector<128x384xf32>, vector<8x384xf32> -> vector<8x384xf32>
    %187 = vector.broadcast %1 : vector<1x384xf32> to vector<8x384xf32>
    %188 = arith.addf %186, %187 : vector<8x384xf32>
    %189 = vector.extract_strided_slice %185 {offsets = [0, 0], sizes = [8, 128], strides = [1, 1]} : vector<8x384xf32> to vector<8x128xf32>
    %190 = vector.extract_strided_slice %188 {offsets = [0, 0], sizes = [8, 128], strides = [1, 1]} : vector<8x384xf32> to vector<8x128xf32>
    %191 = arith.addf %189, %190 : vector<8x128xf32>
    %192 = arith.negf %191 : vector<8x128xf32>
    %193 = math.exp %192 : vector<8x128xf32>
    %cst_46 = arith.constant 1.000000e+00 : f32
    %194 = vector.broadcast %cst_46 : f32 to vector<8x128xf32>
    %195 = arith.addf %194, %193 : vector<8x128xf32>
    %196 = arith.divf %194, %195 : vector<8x128xf32>
    %197 = vector.extract_strided_slice %185 {offsets = [0, 128], sizes = [8, 128], strides = [1, 1]} : vector<8x384xf32> to vector<8x128xf32>
    %198 = vector.extract_strided_slice %188 {offsets = [0, 128], sizes = [8, 128], strides = [1, 1]} : vector<8x384xf32> to vector<8x128xf32>
    %199 = arith.addf %197, %198 : vector<8x128xf32>
    %200 = arith.negf %199 : vector<8x128xf32>
    %201 = math.exp %200 : vector<8x128xf32>
    %cst_47 = arith.constant 1.000000e+00 : f32
    %202 = vector.broadcast %cst_47 : f32 to vector<8x128xf32>
    %203 = arith.addf %202, %201 : vector<8x128xf32>
    %204 = arith.divf %202, %203 : vector<8x128xf32>
    %205 = vector.extract_strided_slice %185 {offsets = [0, 256], sizes = [8, 128], strides = [1, 1]} : vector<8x384xf32> to vector<8x128xf32>
    %206 = vector.extract_strided_slice %188 {offsets = [0, 256], sizes = [8, 128], strides = [1, 1]} : vector<8x384xf32> to vector<8x128xf32>
    %207 = arith.mulf %196, %206 : vector<8x128xf32>
    %208 = arith.addf %205, %207 : vector<8x128xf32>
    %209 = math.tanh %208 : vector<8x128xf32>
    %cst_48 = arith.constant 1.000000e+00 : f32
    %210 = vector.broadcast %cst_48 : f32 to vector<8x128xf32>
    %211 = arith.subf %210, %204 : vector<8x128xf32>
    %212 = arith.mulf %211, %209 : vector<8x128xf32>
    %213 = arith.mulf %204, %178 : vector<8x128xf32>
    %214 = arith.addf %212, %213 : vector<8x128xf32>
    %215 = arith.index_cast %c5_i32 : i32 to index
    %c0_49 = arith.constant 0 : index
    %c0_50 = arith.constant 0 : index
    %216 = vector.load %arg5[%215, %c0_49, %c0_50] : memref<8x8x128xf32, #tpu.memory_space<vmem>>, vector<1x8x128xf32>
    %217 = vector.shape_cast %216 : vector<1x8x128xf32> to vector<8x128xf32>
    %218 = vector.shape_cast %214 : vector<8x128xf32> to vector<1x8x128xf32>
    tpu.vector_store %arg5[%215, %c0_49, %c0_50], %218 {strides = array<i32>} : memref<8x8x128xf32, #tpu.memory_space<vmem>>, vector<1x8x128xf32>,
    %c6_i32 = arith.constant 6 : i32
    %219 = arith.index_cast %c6_i32 : i32 to index
    %c0_51 = arith.constant 0 : index
    %c0_52 = arith.constant 0 : index
    %220 = vector.load %arg1[%219, %c0_51, %c0_52] : memref<8x8x384xf32, #tpu.memory_space<vmem>>, vector<1x8x384xf32>
    %221 = vector.shape_cast %220 : vector<1x8x384xf32> to vector<8x384xf32>
    %cst_53 = arith.constant dense<0.000000e+00> : vector<8x384xf32>
    %222 = tpu.matmul %214, %0, %cst_53 {dimension_numbers = #tpu.dot_dimension_numbers<[1], [0], [0], [1], [0, 0, 1, 1], [], []>} : vector<8x128xf32>, vector<128x384xf32>, vector<8x384xf32> -> vector<8x384xf32>
    %223 = vector.broadcast %1 : vector<1x384xf32> to vector<8x384xf32>
    %224 = arith.addf %222, %223 : vector<8x384xf32>
    %225 = vector.extract_strided_slice %221 {offsets = [0, 0], sizes = [8, 128], strides = [1, 1]} : vector<8x384xf32> to vector<8x128xf32>
    %226 = vector.extract_strided_slice %224 {offsets = [0, 0], sizes = [8, 128], strides = [1, 1]} : vector<8x384xf32> to vector<8x128xf32>
    %227 = arith.addf %225, %226 : vector<8x128xf32>
    %228 = arith.negf %227 : vector<8x128xf32>
    %229 = math.exp %228 : vector<8x128xf32>
    %cst_54 = arith.constant 1.000000e+00 : f32
    %230 = vector.broadcast %cst_54 : f32 to vector<8x128xf32>
    %231 = arith.addf %230, %229 : vector<8x128xf32>
    %232 = arith.divf %230, %231 : vector<8x128xf32>
    %233 = vector.extract_strided_slice %221 {offsets = [0, 128], sizes = [8, 128], strides = [1, 1]} : vector<8x384xf32> to vector<8x128xf32>
    %234 = vector.extract_strided_slice %224 {offsets = [0, 128], sizes = [8, 128], strides = [1, 1]} : vector<8x384xf32> to vector<8x128xf32>
    %235 = arith.addf %233, %234 : vector<8x128xf32>
    %236 = arith.negf %235 : vector<8x128xf32>
    %237 = math.exp %236 : vector<8x128xf32>
    %cst_55 = arith.constant 1.000000e+00 : f32
    %238 = vector.broadcast %cst_55 : f32 to vector<8x128xf32>
    %239 = arith.addf %238, %237 : vector<8x128xf32>
    %240 = arith.divf %238, %239 : vector<8x128xf32>
    %241 = vector.extract_strided_slice %221 {offsets = [0, 256], sizes = [8, 128], strides = [1, 1]} : vector<8x384xf32> to vector<8x128xf32>
    %242 = vector.extract_strided_slice %224 {offsets = [0, 256], sizes = [8, 128], strides = [1, 1]} : vector<8x384xf32> to vector<8x128xf32>
    %243 = arith.mulf %232, %242 : vector<8x128xf32>
    %244 = arith.addf %241, %243 : vector<8x128xf32>
    %245 = math.tanh %244 : vector<8x128xf32>
    %cst_56 = arith.constant 1.000000e+00 : f32
    %246 = vector.broadcast %cst_56 : f32 to vector<8x128xf32>
    %247 = arith.subf %246, %240 : vector<8x128xf32>
    %248 = arith.mulf %247, %245 : vector<8x128xf32>
    %249 = arith.mulf %240, %214 : vector<8x128xf32>
    %250 = arith.addf %248, %249 : vector<8x128xf32>
    %251 = arith.index_cast %c6_i32 : i32 to index
    %c0_57 = arith.constant 0 : index
    %c0_58 = arith.constant 0 : index
    %252 = vector.load %arg5[%251, %c0_57, %c0_58] : memref<8x8x128xf32, #tpu.memory_space<vmem>>, vector<1x8x128xf32>
    %253 = vector.shape_cast %252 : vector<1x8x128xf32> to vector<8x128xf32>
    %254 = vector.shape_cast %250 : vector<8x128xf32> to vector<1x8x128xf32>
    tpu.vector_store %arg5[%251, %c0_57, %c0_58], %254 {strides = array<i32>} : memref<8x8x128xf32, #tpu.memory_space<vmem>>, vector<1x8x128xf32>,
    %c7_i32 = arith.constant 7 : i32
    %255 = arith.index_cast %c7_i32 : i32 to index
    %c0_59 = arith.constant 0 : index
    %c0_60 = arith.constant 0 : index
    %256 = vector.load %arg1[%255, %c0_59, %c0_60] : memref<8x8x384xf32, #tpu.memory_space<vmem>>, vector<1x8x384xf32>
    %257 = vector.shape_cast %256 : vector<1x8x384xf32> to vector<8x384xf32>
    %cst_61 = arith.constant dense<0.000000e+00> : vector<8x384xf32>
    %258 = tpu.matmul %250, %0, %cst_61 {dimension_numbers = #tpu.dot_dimension_numbers<[1], [0], [0], [1], [0, 0, 1, 1], [], []>} : vector<8x128xf32>, vector<128x384xf32>, vector<8x384xf32> -> vector<8x384xf32>
    %259 = vector.broadcast %1 : vector<1x384xf32> to vector<8x384xf32>
    %260 = arith.addf %258, %259 : vector<8x384xf32>
    %261 = vector.extract_strided_slice %257 {offsets = [0, 0], sizes = [8, 128], strides = [1, 1]} : vector<8x384xf32> to vector<8x128xf32>
    %262 = vector.extract_strided_slice %260 {offsets = [0, 0], sizes = [8, 128], strides = [1, 1]} : vector<8x384xf32> to vector<8x128xf32>
    %263 = arith.addf %261, %262 : vector<8x128xf32>
    %264 = arith.negf %263 : vector<8x128xf32>
    %265 = math.exp %264 : vector<8x128xf32>
    %cst_62 = arith.constant 1.000000e+00 : f32
    %266 = vector.broadcast %cst_62 : f32 to vector<8x128xf32>
    %267 = arith.addf %266, %265 : vector<8x128xf32>
    %268 = arith.divf %266, %267 : vector<8x128xf32>
    %269 = vector.extract_strided_slice %257 {offsets = [0, 128], sizes = [8, 128], strides = [1, 1]} : vector<8x384xf32> to vector<8x128xf32>
    %270 = vector.extract_strided_slice %260 {offsets = [0, 128], sizes = [8, 128], strides = [1, 1]} : vector<8x384xf32> to vector<8x128xf32>
    %271 = arith.addf %269, %270 : vector<8x128xf32>
    %272 = arith.negf %271 : vector<8x128xf32>
    %273 = math.exp %272 : vector<8x128xf32>
    %cst_63 = arith.constant 1.000000e+00 : f32
    %274 = vector.broadcast %cst_63 : f32 to vector<8x128xf32>
    %275 = arith.addf %274, %273 : vector<8x128xf32>
    %276 = arith.divf %274, %275 : vector<8x128xf32>
    %277 = vector.extract_strided_slice %257 {offsets = [0, 256], sizes = [8, 128], strides = [1, 1]} : vector<8x384xf32> to vector<8x128xf32>
    %278 = vector.extract_strided_slice %260 {offsets = [0, 256], sizes = [8, 128], strides = [1, 1]} : vector<8x384xf32> to vector<8x128xf32>
    %279 = arith.mulf %268, %278 : vector<8x128xf32>
    %280 = arith.addf %277, %279 : vector<8x128xf32>
    %281 = math.tanh %280 : vector<8x128xf32>
    %cst_64 = arith.constant 1.000000e+00 : f32
    %282 = vector.broadcast %cst_64 : f32 to vector<8x128xf32>
    %283 = arith.subf %282, %276 : vector<8x128xf32>
    %284 = arith.mulf %283, %281 : vector<8x128xf32>
    %285 = arith.mulf %276, %250 : vector<8x128xf32>
    %286 = arith.addf %284, %285 : vector<8x128xf32>
    %287 = arith.index_cast %c7_i32 : i32 to index
    %c0_65 = arith.constant 0 : index
    %c0_66 = arith.constant 0 : index
    %288 = vector.load %arg5[%287, %c0_65, %c0_66] : memref<8x8x128xf32, #tpu.memory_space<vmem>>, vector<1x8x128xf32>
    %289 = vector.shape_cast %288 : vector<1x8x128xf32> to vector<8x128xf32>
    %290 = vector.shape_cast %286 : vector<8x128xf32> to vector<1x8x128xf32>
    tpu.vector_store %arg5[%287, %c0_65, %c0_66], %290 {strides = array<i32>} : memref<8x8x128xf32, #tpu.memory_space<vmem>>, vector<1x8x128xf32>,
    %c8_i32 = arith.constant 8 : i32
    %c4 = arith.constant 4 : index
    %c0_67 = arith.constant 0 : index
    %c0_68 = arith.constant 0 : index
    %291 = vector.load %arg5[%c4, %c0_67, %c0_68] : memref<8x8x128xf32, #tpu.memory_space<vmem>>, vector<4x8x128xf32>
    %c0_69 = arith.constant 0 : index
    %c0_70 = arith.constant 0 : index
    %c0_71 = arith.constant 0 : index
    %292 = vector.load %arg4[%c0_69, %c0_70, %c0_71] : memref<4x8x128xf32, #tpu.memory_space<vmem>>, vector<4x8x128xf32>
    tpu.vector_store %arg4[%c0_69, %c0_70, %c0_71], %291 {strides = array<i32>} : memref<4x8x128xf32, #tpu.memory_space<vmem>>, vector<4x8x128xf32>,
    return
  }
  func.func @transform_0(%arg0: i32) -> (i32, i32, i32) {
    %c0_i32 = arith.constant 0 : i32
    %c0_i32_0 = arith.constant 0 : i32
    %c0_i32_1 = arith.constant 0 : i32
    return %c0_i32, %arg0, %c0_i32_0 : i32, i32, i32
  }
  func.func @transform_1(%arg0: i32) -> (i32, i32) {
    %c0_i32 = arith.constant 0 : i32
    %c0_i32_0 = arith.constant 0 : i32
    %c0_i32_1 = arith.constant 0 : i32
    return %c0_i32, %c0_i32_0 : i32, i32
  }
  func.func @transform_2(%arg0: i32) -> (i32, i32) {
    %c0_i32 = arith.constant 0 : i32
    %c0_i32_0 = arith.constant 0 : i32
    %c0_i32_1 = arith.constant 0 : i32
    return %c0_i32, %c0_i32_0 : i32, i32
  }
  func.func @transform_3(%arg0: i32) -> (i32, i32, i32) {
    %c0_i32 = arith.constant 0 : i32
    %c0_i32_0 = arith.constant 0 : i32
    %c0_i32_1 = arith.constant 0 : i32
    return %c0_i32, %arg0, %c0_i32_0 : i32, i32, i32
  }
}

module attributes {stable_mosaic.version = 11 : i64} {
  func.func @matmul_bias_kernel(%arg0: i32, %arg1: i32, %arg2: memref<32x128xf32, #tpu.memory_space<vmem>>, %arg3: memref<128x128xf32, #tpu.memory_space<vmem>>, %arg4: memref<1x128xf32, #tpu.memory_space<vmem>>, %arg5: memref<32x128xf32, #tpu.memory_space<vmem>>) attributes {dimension_semantics = [#tpu.dimension_semantics<parallel>, #tpu.dimension_semantics<parallel>], iteration_bounds = array<i64: 1, 1>, scalar_prefetch = 0 : i64, scratch_operands = 0 : i64, tpu.core_type = #tpu.core_type<tc>, window_params = [{transform_indices = @transform_0, window_bounds = array<i64: 32, 128>}, {transform_indices = @transform_1, window_bounds = array<i64: 128, 128>}, {transform_indices = @transform_2, window_bounds = array<i64: 1, 128>}, {transform_indices = @transform_3, window_bounds = array<i64: 32, 128>}]} {
    %c0 = arith.constant 0 : index
    %c0_0 = arith.constant 0 : index
    %0 = vector.load %arg2[%c0, %c0_0] : memref<32x128xf32, #tpu.memory_space<vmem>>, vector<32x128xf32>
    %c0_1 = arith.constant 0 : index
    %c0_2 = arith.constant 0 : index
    %1 = vector.load %arg3[%c0_1, %c0_2] : memref<128x128xf32, #tpu.memory_space<vmem>>, vector<128x128xf32>
    %cst = arith.constant dense<0.000000e+00> : vector<32x128xf32>
    %2 = tpu.matmul %0, %1, %cst {dimension_numbers = #tpu.dot_dimension_numbers<[1], [0], [0], [1], [0, 0, 1, 1], [], []>} : vector<32x128xf32>, vector<128x128xf32>, vector<32x128xf32> -> vector<32x128xf32>
    %c0_3 = arith.constant 0 : index
    %c0_4 = arith.constant 0 : index
    %3 = vector.load %arg4[%c0_3, %c0_4] : memref<1x128xf32, #tpu.memory_space<vmem>>, vector<1x128xf32>
    %4 = vector.broadcast %3 : vector<1x128xf32> to vector<32x128xf32>
    %5 = arith.addf %2, %4 : vector<32x128xf32>
    %c0_5 = arith.constant 0 : index
    %c0_6 = arith.constant 0 : index
    %6 = vector.load %arg5[%c0_5, %c0_6] : memref<32x128xf32, #tpu.memory_space<vmem>>, vector<32x128xf32>
    tpu.vector_store %arg5[%c0_5, %c0_6], %5 {strides = array<i32>} : memref<32x128xf32, #tpu.memory_space<vmem>>, vector<32x128xf32>,
    return
  }
  func.func @transform_0(%arg0: i32, %arg1: i32) -> (i32, i32) {
    %c0_i32 = arith.constant 0 : i32
    %c0_i32_0 = arith.constant 0 : i32
    return %arg0, %c0_i32 : i32, i32
  }
  func.func @transform_1(%arg0: i32, %arg1: i32) -> (i32, i32) {
    %c0_i32 = arith.constant 0 : i32
    %c0_i32_0 = arith.constant 0 : i32
    return %c0_i32, %arg1 : i32, i32
  }
  func.func @transform_2(%arg0: i32, %arg1: i32) -> (i32, i32) {
    %c0_i32 = arith.constant 0 : i32
    %c0_i32_0 = arith.constant 0 : i32
    return %c0_i32, %arg1 : i32, i32
  }
  func.func @transform_3(%arg0: i32, %arg1: i32) -> (i32, i32) {
    %c0_i32 = arith.constant 0 : i32
    return %arg0, %arg1 : i32, i32
  }
}

</mosaic_0001>

<llo_original>
// kernel: gru4rec_forward.5
$region0: #{gru4rec_forward.5}
  #allocation0 [shape = 'u32[]', space=smem, size = 0x4, offset = 0x4, fixed_abs, tag = 'smem constant byte address 0x4 - core index']
  #allocation1 [shape = 'u32[144,128]{1,0:T(1,128)}', space=vmem, size = 0x12000, scoped, tag = 'internal scratch']
  %s0 = inlined_call_operand.vmem [shape: f32[32,128], index: 0, kind: input, shape index: {}]
  %s1 = inlined_call_operand.vmem [shape: f32[128,128], index: 1, kind: input, shape index: {}]
  %s2 = inlined_call_operand.vmem [shape: f32[1,128], index: 2, kind: input, shape index: {}]
  %s3 = inlined_call_operand.vmem [shape: f32[32,128], index: 3, kind: output, shape index: {}]
  %s4 = sld [smem:[#allocation0]]
  $region22: #{gru4rec_forward.5} parent=0
    _
  %s6 = ssub.s32 1, %s4
  %s7 = scalar_select 0, %s6, %s4
  // Predicated region
  $region2: #{gru4rec_forward.5} parent=0 // pred_check
    _
  $region3: #{gru4rec_forward.5} parent=0 // pred_check_branch
    %9 = sbr.rel (0) target = $region5
  $region4: #{gru4rec_forward.5} parent=0 // pred_region
    _
  $region5: #{gru4rec_forward.5} parent=0 // pred_fallthru
    _
  // Predicated region
  $region6: #{gru4rec_forward.5} parent=0 // pred_check
    _
  $region7: #{gru4rec_forward.5} parent=0 // pred_check_branch
    %11 = sbr.rel (0) target = $region9
  $region8: #{gru4rec_forward.5} parent=0 // pred_region
    _
  $region9: #{gru4rec_forward.5} parent=0 // pred_fallthru
    _
  // Predicated region
  $region10: #{gru4rec_forward.5} parent=0 // pred_check
    _
  $region11: #{gru4rec_forward.5} parent=0 // pred_check_branch
    %13 = sbr.rel (0) target = $region13
  $region12: #{gru4rec_forward.5} parent=0 // pred_region
    _
  $region13: #{gru4rec_forward.5} parent=0 // pred_fallthru
    _
  %v14 = vld [vmem:[%s0] sm:$0xff]
  %v15 = vld [vmem:[%s0 + $0x8] sm:$0xff]
  %v16 = vld [vmem:[%s0 + $0x10] sm:$0xff]
  %v17 = vld [vmem:[%s0 + $0x18] sm:$0xff]
  %v18 = vld [vmem:[%s1] sm:$0xff]
  %v19 = vld [vmem:[%s1 + $0x8] sm:$0xff]
  %v20 = vld [vmem:[%s1 + $0x10] sm:$0xff]
  %v21 = vld [vmem:[%s1 + $0x18] sm:$0xff]
  %v22 = vld [vmem:[%s1 + $0x20] sm:$0xff]
  %v23 = vld [vmem:[%s1 + $0x28] sm:$0xff]
  %v24 = vld [vmem:[%s1 + $0x30] sm:$0xff]
  %v25 = vld [vmem:[%s1 + $0x38] sm:$0xff]
  %v26 = vld [vmem:[%s1 + $0x40] sm:$0xff]
  %v27 = vld [vmem:[%s1 + $0x48] sm:$0xff]
  %v28 = vld [vmem:[%s1 + $0x50] sm:$0xff]
  %v29 = vld [vmem:[%s1 + $0x58] sm:$0xff]
  %v30 = vld [vmem:[%s1 + $0x60] sm:$0xff]
  %v31 = vld [vmem:[%s1 + $0x68] sm:$0xff]
  %v32 = vld [vmem:[%s1 + $0x70] sm:$0xff]
  %v33 = vld [vmem:[%s1 + $0x78] sm:$0xff]
  %v34 = vld [vmem:[%s2] sm:$0x1]
  %v36 = vlaneseq
  %v37 = vshrl.u32 %v36, 7
  %v38 = vsub.s32 0, %v37
  %v39 = vrot.slane %v34, %v38
  %41 = vmatprep.subr.mxu0 0.0
  %42 = vmatpush1.msra.mxu0 %v18
  %43 = vmatprep.subr.mxu0 0.0
  %44 = vmatpush1.msra.mxu0 %v19
  %45 = vmatprep.subr.mxu0 0.0
  %46 = vmatpush1.msra.mxu0 %v20
  %47 = vmatprep.subr.mxu0 0.0
  %48 = vmatpush1.msra.mxu0 %v21
  %49 = vmatprep.subr.mxu0 0.0
  %50 = vmatpush1.msra.mxu0 %v22
  %51 = vmatprep.subr.mxu0 0.0
  %52 = vmatpush1.msra.mxu0 %v23
  %53 = vmatprep.subr.mxu0 0.0
  %54 = vmatpush1.msra.mxu0 %v24
  %55 = vmatprep.subr.mxu0 0.0
  %56 = vmatpush1.msra.mxu0 %v25
  %57 = vmatprep.subr.mxu0 0.0
  %58 = vmatpush1.msra.mxu0 %v26
  %59 = vmatprep.subr.mxu0 0.0
  %60 = vmatpush1.msra.mxu0 %v27
  %61 = vmatprep.subr.mxu0 0.0
  %62 = vmatpush1.msra.mxu0 %v28
  %63 = vmatprep.subr.mxu0 0.0
  %64 = vmatpush1.msra.mxu0 %v29
  %65 = vmatprep.subr.mxu0 0.0
  %66 = vmatpush1.msra.mxu0 %v30
  %67 = vmatprep.subr.mxu0 0.0
  %68 = vmatpush1.msra.mxu0 %v31
  %69 = vmatprep.subr.mxu0 0.0
  %70 = vmatpush1.msra.mxu0 %v32
  %71 = vmatprep.subr.mxu0 0.0
  %72 = vmatpush1.msra.mxu0 %v33
  %73 = vmatprep.subr.mxu0 0.0
  %74 = vmatpush1.msra.mxu0 0.0
  %75 = vmatprep.subr.mxu0 0.0
  %76 = vmatpush1.msra.mxu0 0.0
  %77 = vmatprep.subr.mxu0 0.0
  %78 = vmatpush1.msra.mxu0 0.0
  %79 = vmatprep.subr.mxu0 0.0
  %80 = vmatpush1.msra.mxu0 0.0
  %81 = vmatprep.subr.mxu0 0.0
  %82 = vmatpush1.msra.mxu0 0.0
  %83 = vmatprep.subr.mxu0 0.0
  %84 = vmatpush1.msra.mxu0 0.0
  %85 = vmatprep.subr.mxu0 0.0
  %86 = vmatpush1.msra.mxu0 0.0
  %87 = vmatprep.subr.mxu0 0.0
  %88 = vmatpush1.msra.mxu0 0.0
  %89 = vmatprep.subr.mxu0 0.0
  %90 = vmatpush1.msra.mxu0 0.0
  %91 = vmatprep.subr.mxu0 0.0
  %92 = vmatpush1.msra.mxu0 0.0
  %93 = vmatprep.subr.mxu0 0.0
  %94 = vmatpush1.msra.mxu0 0.0
  %95 = vmatprep.subr.mxu0 0.0
  %96 = vmatpush1.msra.mxu0 0.0
  %97 = vmatprep.subr.mxu0 0.0
  %98 = vmatpush1.msra.mxu0 0.0
  %99 = vmatprep.subr.mxu0 0.0
  %100 = vmatpush1.msra.mxu0 0.0
  %101 = vmatprep.subr.mxu0 0.0
  %102 = vmatpush1.msra.mxu0 0.0
  %103 = vmatprep.subr.mxu0 0.0
  %104 = vmatpush1.msra.mxu0 0.0
  %105 = vmatprep.mubr.f32.mxu0 0.0
  %106 = vmatmul.mubr.f32.gmra.mrb[0].mxu0 %v14
  %v107 = vpop.f32.mrb[0].mxu0
  %v108 = vadd.f32 %v39, %v107
  %v109 = vpop.f32.mrb[0].mxu0
  %110 = vmatprep.mubr.f32.mxu0 0.0
  %111 = vmatmul.mubr.f32.gmra.mrb[0].mxu0 %v15
  %v112 = vpop.f32.mrb[0].mxu0
  %v113 = vadd.f32 %v39, %v112
  %v114 = vpop.f32.mrb[0].mxu0
  %115 = vmatprep.mubr.f32.mxu0 0.0
  %116 = vmatmul.mubr.f32.gmra.mrb[0].mxu0 %v16
  %v117 = vpop.f32.mrb[0].mxu0
  %v118 = vadd.f32 %v39, %v117
  %v119 = vpop.f32.mrb[0].mxu0
  %120 = vmatprep.mubr.f32.mxu0 0.0
  %121 = vmatmul.mubr.f32.gmra.mrb[0].mxu0 %v17
  %v122 = vpop.f32.mrb[0].mxu0
  %v123 = vadd.f32 %v39, %v122
  %v124 = vpop.f32.mrb[0].mxu0
  %125 = vdwg.mxu0
  %126 = vst [vmem:[%s3] sm:$0xff] %v108
  %127 = vst [vmem:[%s3 + $0x8] sm:$0xff] %v113
  %128 = vst [vmem:[%s3 + $0x10] sm:$0xff] %v118
  %129 = vst [vmem:[%s3 + $0x18] sm:$0xff] %v123
  // Predicated region
  $region14: #{gru4rec_forward.5} parent=0 // pred_check
    _
  $region15: #{gru4rec_forward.5} parent=0 // pred_check_branch
    %131 = sbr.rel (0) target = $region17
  $region16: #{gru4rec_forward.5} parent=0 // pred_region
    _
  $region17: #{gru4rec_forward.5} parent=0 // pred_fallthru
    _
  // Predicated region
  $region18: #{gru4rec_forward.5} parent=0 // pred_check
    _
  $region19: #{gru4rec_forward.5} parent=0 // pred_check_branch
    %133 = sbr.rel (0) target = $region21
  $region20: #{gru4rec_forward.5} parent=0 // pred_region
    _
  $region21: #{gru4rec_forward.5} parent=0 // pred_fallthru
    _

// kernel: gru4rec_forward.3
$region0: #{gru4rec_forward.3}
  #allocation0 [shape = 'u32[]', space=smem, size = 0x4, offset = 0x4, fixed_abs, tag = 'smem constant byte address 0x4 - core index']
  #allocation1 [shape = 'u32[144,128]{1,0:T(1,128)}', space=vmem, size = 0x12000, scoped, tag = 'internal scratch']
  %s0 = inlined_call_operand.vmem [shape: f32[64,16], index: 0, kind: input, shape index: {}]
  %s1 = inlined_call_operand.vmem [shape: f32[16,384], index: 1, kind: input, shape index: {}]
  %s2 = inlined_call_operand.vmem [shape: f32[1,384], index: 2, kind: input, shape index: {}]
  %s3 = inlined_call_operand.vmem [shape: f32[64,384], index: 3, kind: output, shape index: {}]
  %s4 = sld [smem:[#allocation0]]
  $region22: #{gru4rec_forward.3} parent=0
    _
  %s6 = ssub.s32 1, %s4
  %s7 = scalar_select 0, %s6, %s4
  // Predicated region
  $region2: #{gru4rec_forward.3} parent=0 // pred_check
    _
  $region3: #{gru4rec_forward.3} parent=0 // pred_check_branch
    %9 = sbr.rel (0) target = $region5
  $region4: #{gru4rec_forward.3} parent=0 // pred_region
    _
  $region5: #{gru4rec_forward.3} parent=0 // pred_fallthru
    _
  // Predicated region
  $region6: #{gru4rec_forward.3} parent=0 // pred_check
    _
  $region7: #{gru4rec_forward.3} parent=0 // pred_check_branch
    %11 = sbr.rel (0) target = $region9
  $region8: #{gru4rec_forward.3} parent=0 // pred_region
    _
  $region9: #{gru4rec_forward.3} parent=0 // pred_fallthru
    _
  // Predicated region
  $region10: #{gru4rec_forward.3} parent=0 // pred_check
    _
  $region11: #{gru4rec_forward.3} parent=0 // pred_check_branch
    %13 = sbr.rel (0) target = $region13
  $region12: #{gru4rec_forward.3} parent=0 // pred_region
    _
  $region13: #{gru4rec_forward.3} parent=0 // pred_fallthru
    _
  %v14 = vld [vmem:[%s0] sm:$0xff]
  %v15 = vld [vmem:[%s0 + $0x8] sm:$0xff]
  %v16 = vld [vmem:[%s0 + $0x10] sm:$0xff]
  %v17 = vld [vmem:[%s0 + $0x18] sm:$0xff]
  %v18 = vld [vmem:[%s0 + $0x20] sm:$0xff]
  %v19 = vld [vmem:[%s0 + $0x28] sm:$0xff]
  %v20 = vld [vmem:[%s0 + $0x30] sm:$0xff]
  %v21 = vld [vmem:[%s0 + $0x38] sm:$0xff]
  %v22 = vld [vmem:[%s1] sm:$0xff]
  %v23 = vld [vmem:[%s1 + $0x8] sm:$0xff]
  %v24 = vld [vmem:[%s1 + $0x10] sm:$0xff]
  %v25 = vld [vmem:[%s1 + $0x18] sm:$0xff]
  %v26 = vld [vmem:[%s1 + $0x20] sm:$0xff]
  %v27 = vld [vmem:[%s1 + $0x28] sm:$0xff]
  %v28 = vld [vmem:[%s2] sm:$0x7]
  %v30 = vlaneseq
  %v31 = vshrl.u32 %v30, 7
  %v32 = vsub.s32 0, %v31
  %v33 = vrot.slane %v28, %v32
  %v34 = vlaneseq
  %v35 = vshrl.u32 %v34, 7
  %v36 = vsub.s32 1, %v35
  %v37 = vrot.slane %v28, %v36
  %v38 = vlaneseq
  %v39 = vshrl.u32 %v38, 7
  %v40 = vsub.s32 2, %v39
  %v41 = vrot.slane %v28, %v40
  %vm45 = vcmask 130048
  %v47 = vsel %vm45, %v14, 0
  %v50 = vsel %vm45, %v15, 0
  %v53 = vsel %vm45, %v16, 0
  %v56 = vsel %vm45, %v17, 0
  %v59 = vsel %vm45, %v18, 0
  %v62 = vsel %vm45, %v19, 0
  %v65 = vsel %vm45, %v20, 0
  %v68 = vsel %vm45, %v21, 0
  %70 = vmatprep.subr.mxu0 %v23
  %71 = vmatpush1.msra.mxu0 %v22
  %72 = vmatprep.subr.mxu0 %v26
  %73 = vmatpush1.msra.mxu0 %v25
  %74 = vmatprep.subr.mxu0 0.0
  %75 = vmatpush1.msra.mxu0 0.0
  %76 = vmatprep.subr.mxu0 0.0
  %77 = vmatpush1.msra.mxu0 0.0
  %78 = vmatprep.subr.mxu0 0.0
  %79 = vmatpush1.msra.mxu0 0.0
  %80 = vmatprep.subr.mxu0 0.0
  %81 = vmatpush1.msra.mxu0 0.0
  %82 = vmatprep.subr.mxu0 0.0
  %83 = vmatpush1.msra.mxu0 0.0
  %84 = vmatprep.subr.mxu0 0.0
  %85 = vmatpush1.msra.mxu0 0.0
  %86 = vmatprep.subr.mxu0 0.0
  %87 = vmatpush1.msra.mxu0 0.0
  %88 = vmatprep.subr.mxu0 0.0
  %89 = vmatpush1.msra.mxu0 0.0
  %90 = vmatprep.subr.mxu0 0.0
  %91 = vmatpush1.msra.mxu0 0.0
  %92 = vmatprep.subr.mxu0 0.0
  %93 = vmatpush1.msra.mxu0 0.0
  %94 = vmatprep.subr.mxu0 0.0
  %95 = vmatpush1.msra.mxu0 0.0
  %96 = vmatprep.subr.mxu0 0.0
  %97 = vmatpush1.msra.mxu0 0.0
  %98 = vmatprep.subr.mxu0 0.0
  %99 = vmatpush1.msra.mxu0 0.0
  %100 = vmatprep.subr.mxu0 0.0
  %101 = vmatpush1.msra.mxu0 0.0
  %102 = vmatprep.subr.mxu0 0.0
  %103 = vmatpush1.msra.mxu0 0.0
  %104 = vmatprep.subr.mxu0 0.0
  %105 = vmatpush1.msra.mxu0 0.0
  %106 = vmatprep.subr.mxu0 0.0
  %107 = vmatpush1.msra.mxu0 0.0
  %108 = vmatprep.subr.mxu0 0.0
  %109 = vmatpush1.msra.mxu0 0.0
  %110 = vmatprep.subr.mxu0 0.0
  %111 = vmatpush1.msra.mxu0 0.0
  %112 = vmatprep.subr.mxu0 0.0
  %113 = vmatpush1.msra.mxu0 0.0
  %114 = vmatprep.subr.mxu0 0.0
  %115 = vmatpush1.msra.mxu0 0.0
  %116 = vmatprep.subr.mxu0 0.0
  %117 = vmatpush1.msra.mxu0 0.0
  %118 = vmatprep.subr.mxu0 0.0
  %119 = vmatpush1.msra.mxu0 0.0
  %120 = vmatprep.subr.mxu0 0.0
  %121 = vmatpush1.msra.mxu0 0.0
  %122 = vmatprep.subr.mxu0 0.0
  %123 = vmatpush1.msra.mxu0 0.0
  %124 = vmatprep.subr.mxu0 0.0
  %125 = vmatpush1.msra.mxu0 0.0
  %126 = vmatprep.subr.mxu0 0.0
  %127 = vmatpush1.msra.mxu0 0.0
  %128 = vmatprep.subr.mxu0 0.0
  %129 = vmatpush1.msra.mxu0 0.0
  %130 = vmatprep.subr.mxu0 0.0
  %131 = vmatpush1.msra.mxu0 0.0
  %132 = vmatprep.subr.mxu0 0.0
  %133 = vmatpush1.msra.mxu0 0.0
  %134 = vmatprep.mubr.f32.mxu0 0.0
  %135 = vmatmul.mubr.f32.gmra.mrb[0].mxu0 %v47
  %v136 = vpop.f32.mrb[0].mxu0
  %v137 = vadd.f32 %v33, %v136
  %v138 = vpop.f32.mrb[0].mxu0
  %v139 = vadd.f32 %v37, %v138
  %140 = vmatprep.mubr.f32.mxu0 0.0
  %141 = vmatmul.mubr.f32.gmra.mrb[0].mxu0 %v50
  %v142 = vpop.f32.mrb[0].mxu0
  %v143 = vadd.f32 %v33, %v142
  %v144 = vpop.f32.mrb[0].mxu0
  %v145 = vadd.f32 %v37, %v144
  %146 = vmatprep.mubr.f32.mxu0 0.0
  %147 = vmatmul.mubr.f32.gmra.mrb[0].mxu0 %v53
  %v148 = vpop.f32.mrb[0].mxu0
  %v149 = vadd.f32 %v33, %v148
  %v150 = vpop.f32.mrb[0].mxu0
  %v151 = vadd.f32 %v37, %v150
  %152 = vmatprep.mubr.f32.mxu0 0.0
  %153 = vmatmul.mubr.f32.gmra.mrb[0].mxu0 %v56
  %v154 = vpop.f32.mrb[0].mxu0
  %v155 = vadd.f32 %v33, %v154
  %v156 = vpop.f32.mrb[0].mxu0
  %v157 = vadd.f32 %v37, %v156
  %158 = vmatprep.mubr.f32.mxu0 0.0
  %159 = vmatmul.mubr.f32.gmra.mrb[0].mxu0 %v59
  %v160 = vpop.f32.mrb[0].mxu0
  %v161 = vadd.f32 %v33, %v160
  %v162 = vpop.f32.mrb[0].mxu0
  %v163 = vadd.f32 %v37, %v162
  %164 = vmatprep.mubr.f32.mxu0 0.0
  %165 = vmatmul.mubr.f32.gmra.mrb[0].mxu0 %v62
  %v166 = vpop.f32.mrb[0].mxu0
  %v167 = vadd.f32 %v33, %v166
  %v168 = vpop.f32.mrb[0].mxu0
  %v169 = vadd.f32 %v37, %v168
  %170 = vmatprep.mubr.f32.mxu0 0.0
  %171 = vmatmul.mubr.f32.gmra.mrb[0].mxu0 %v65
  %v172 = vpop.f32.mrb[0].mxu0
  %v173 = vadd.f32 %v33, %v172
  %v174 = vpop.f32.mrb[0].mxu0
  %v175 = vadd.f32 %v37, %v174
  %176 = vmatprep.mubr.f32.mxu0 0.0
  %177 = vmatmul.mubr.f32.gmra.mrb[0].mxu0 %v68
  %v178 = vpop.f32.mrb[0].mxu0
  %v179 = vadd.f32 %v33, %v178
  %v180 = vpop.f32.mrb[0].mxu0
  %v181 = vadd.f32 %v37, %v180
  %182 = vdwg.mxu0
  %183 = vmatprep.subr.mxu0 0.0
  %184 = vmatpush1.msra.mxu0 %v24
  %185 = vmatprep.subr.mxu0 0.0
  %186 = vmatpush1.msra.mxu0 %v27
  %187 = vmatprep.subr.mxu0 0.0
  %188 = vmatpush1.msra.mxu0 0.0
  %189 = vmatprep.subr.mxu0 0.0
  %190 = vmatpush1.msra.mxu0 0.0
  %191 = vmatprep.subr.mxu0 0.0
  %192 = vmatpush1.msra.mxu0 0.0
  %193 = vmatprep.subr.mxu0 0.0
  %194 = vmatpush1.msra.mxu0 0.0
  %195 = vmatprep.subr.mxu0 0.0
  %196 = vmatpush1.msra.mxu0 0.0
  %197 = vmatprep.subr.mxu0 0.0
  %198 = vmatpush1.msra.mxu0 0.0
  %199 = vmatprep.subr.mxu0 0.0
  %200 = vmatpush1.msra.mxu0 0.0
  %201 = vmatprep.subr.mxu0 0.0
  %202 = vmatpush1.msra.mxu0 0.0
  %203 = vmatprep.subr.mxu0 0.0
  %204 = vmatpush1.msra.mxu0 0.0
  %205 = vmatprep.subr.mxu0 0.0
  %206 = vmatpush1.msra.mxu0 0.0
  %207 = vmatprep.subr.mxu0 0.0
  %208 = vmatpush1.msra.mxu0 0.0
  %209 = vmatprep.subr.mxu0 0.0
  %210 = vmatpush1.msra.mxu0 0.0
  %211 = vmatprep.subr.mxu0 0.0
  %212 = vmatpush1.msra.mxu0 0.0
  %213 = vmatprep.subr.mxu0 0.0
  %214 = vmatpush1.msra.mxu0 0.0
  %215 = vmatprep.subr.mxu0 0.0
  %216 = vmatpush1.msra.mxu0 0.0
  %217 = vmatprep.subr.mxu0 0.0
  %218 = vmatpush1.msra.mxu0 0.0
  %219 = vmatprep.subr.mxu0 0.0
  %220 = vmatpush1.msra.mxu0 0.0
  %221 = vmatprep.subr.mxu0 0.0
  %222 = vmatpush1.msra.mxu0 0.0
  %223 = vmatprep.subr.mxu0 0.0
  %224 = vmatpush1.msra.mxu0 0.0
  %225 = vmatprep.subr.mxu0 0.0
  %226 = vmatpush1.msra.mxu0 0.0
  %227 = vmatprep.subr.mxu0 0.0
  %228 = vmatpush1.msra.mxu0 0.0
  %229 = vmatprep.subr.mxu0 0.0
  %230 = vmatpush1.msra.mxu0 0.0
  %231 = vmatprep.subr.mxu0 0.0
  %232 = vmatpush1.msra.mxu0 0.0
  %233 = vmatprep.subr.mxu0 0.0
  %234 = vmatpush1.msra.mxu0 0.0
  %235 = vmatprep.subr.mxu0 0.0
  %236 = vmatpush1.msra.mxu0 0.0
  %237 = vmatprep.subr.mxu0 0.0
  %238 = vmatpush1.msra.mxu0 0.0
  %239 = vmatprep.subr.mxu0 0.0
  %240 = vmatpush1.msra.mxu0 0.0
  %241 = vmatprep.subr.mxu0 0.0
  %242 = vmatpush1.msra.mxu0 0.0
  %243 = vmatprep.subr.mxu0 0.0
  %244 = vmatpush1.msra.mxu0 0.0
  %245 = vmatprep.subr.mxu0 0.0
  %246 = vmatpush1.msra.mxu0 0.0
  %247 = vmatprep.mubr.f32.mxu0 0.0
  %248 = vmatmul.mubr.f32.gmra.mrb[0].mxu0 %v47
  %v249 = vpop.f32.mrb[0].mxu0
  %v250 = vadd.f32 %v41, %v249
  %v251 = vpop.f32.mrb[0].mxu0
  %252 = vmatprep.mubr.f32.mxu0 0.0
  %253 = vmatmul.mubr.f32.gmra.mrb[0].mxu0 %v50
  %v254 = vpop.f32.mrb[0].mxu0
  %v255 = vadd.f32 %v41, %v254
  %v256 = vpop.f32.mrb[0].mxu0
  %257 = vmatprep.mubr.f32.mxu0 0.0
  %258 = vmatmul.mubr.f32.gmra.mrb[0].mxu0 %v53
  %v259 = vpop.f32.mrb[0].mxu0
  %v260 = vadd.f32 %v41, %v259
  %v261 = vpop.f32.mrb[0].mxu0
  %262 = vmatprep.mubr.f32.mxu0 0.0
  %263 = vmatmul.mubr.f32.gmra.mrb[0].mxu0 %v56
  %v264 = vpop.f32.mrb[0].mxu0
  %v265 = vadd.f32 %v41, %v264
  %v266 = vpop.f32.mrb[0].mxu0
  %267 = vmatprep.mubr.f32.mxu0 0.0
  %268 = vmatmul.mubr.f32.gmra.mrb[0].mxu0 %v59
  %v269 = vpop.f32.mrb[0].mxu0
  %v270 = vadd.f32 %v41, %v269
  %v271 = vpop.f32.mrb[0].mxu0
  %272 = vmatprep.mubr.f32.mxu0 0.0
  %273 = vmatmul.mubr.f32.gmra.mrb[0].mxu0 %v62
  %v274 = vpop.f32.mrb[0].mxu0
  %v275 = vadd.f32 %v41, %v274
  %v276 = vpop.f32.mrb[0].mxu0
  %277 = vmatprep.mubr.f32.mxu0 0.0
  %278 = vmatmul.mubr.f32.gmra.mrb[0].mxu0 %v65
  %v279 = vpop.f32.mrb[0].mxu0
  %v280 = vadd.f32 %v41, %v279
  %v281 = vpop.f32.mrb[0].mxu0
  %282 = vmatprep.mubr.f32.mxu0 0.0
  %283 = vmatmul.mubr.f32.gmra.mrb[0].mxu0 %v68
  %v284 = vpop.f32.mrb[0].mxu0
  %v285 = vadd.f32 %v41, %v284
  %v286 = vpop.f32.mrb[0].mxu0
  %287 = vdwg.mxu0
  %288 = vst [vmem:[%s3] sm:$0xff] %v137
  %289 = vst [vmem:[%s3 + $0x8] sm:$0xff] %v139
  %290 = vst [vmem:[%s3 + $0x10] sm:$0xff] %v250
  %291 = vst [vmem:[%s3 + $0x18] sm:$0xff] %v143
  %292 = vst [vmem:[%s3 + $0x20] sm:$0xff] %v145
  %293 = vst [vmem:[%s3 + $0x28] sm:$0xff] %v255
  %294 = vst [vmem:[%s3 + $0x30] sm:$0xff] %v149
  %295 = vst [vmem:[%s3 + $0x38] sm:$0xff] %v151
  %296 = vst [vmem:[%s3 + $0x40] sm:$0xff] %v260
  %297 = vst [vmem:[%s3 + $0x48] sm:$0xff] %v155
  %298 = vst [vmem:[%s3 + $0x50] sm:$0xff] %v157
  %299 = vst [vmem:[%s3 + $0x58] sm:$0xff] %v265
  %300 = vst [vmem:[%s3 + $0x60] sm:$0xff] %v161
  %301 = vst [vmem:[%s3 + $0x68] sm:$0xff] %v163
  %302 = vst [vmem:[%s3 + $0x70] sm:$0xff] %v270
  %303 = vst [vmem:[%s3 + $0x78] sm:$0xff] %v167
  %304 = vst [vmem:[%s3 + $0x80] sm:$0xff] %v169
  %305 = vst [vmem:[%s3 + $0x88] sm:$0xff] %v275
  %306 = vst [vmem:[%s3 + $0x90] sm:$0xff] %v173
  %307 = vst [vmem:[%s3 + $0x98] sm:$0xff] %v175
  %308 = vst [vmem:[%s3 + $0xa0] sm:$0xff] %v280
  %309 = vst [vmem:[%s3 + $0xa8] sm:$0xff] %v179
  %310 = vst [vmem:[%s3 + $0xb0] sm:$0xff] %v181
  %311 = vst [vmem:[%s3 + $0xb8] sm:$0xff] %v285
  // Predicated region
  $region14: #{gru4rec_forward.3} parent=0 // pred_check
    _
  $region15: #{gru4rec_forward.3} parent=0 // pred_check_branch
    %313 = sbr.rel (0) target = $region17
  $region16: #{gru4rec_forward.3} parent=0 // pred_region
    _
  $region17: #{gru4rec_forward.3} parent=0 // pred_fallthru
    _
  // Predicated region
  $region18: #{gru4rec_forward.3} parent=0 // pred_check
    _
  $region19: #{gru4rec_forward.3} parent=0 // pred_check_branch
    %315 = sbr.rel (0) target = $region21
  $region20: #{gru4rec_forward.3} parent=0 // pred_region
    _
  $region21: #{gru4rec_forward.3} parent=0 // pred_fallthru
    _

// kernel: gru4rec_forward.4
$region0: #{gru4rec_forward.4}
  #allocation0 [shape = 'u32[]', space=smem, size = 0x4, offset = 0x4, fixed_abs, tag = 'smem constant byte address 0x4 - core index']
  #allocation1 [shape = 'u32[144,128]{1,0:T(1,128)}', space=vmem, size = 0x12000, scoped, tag = 'internal scratch']
  #allocation2 [shape = 'f32[8,8,128]{2,1,0:T(8,128)}', space=vmem, size = 0x8000, scoped, tag = 'scratch operand']
  %s0 = inlined_call_operand.vmem [shape: f32[8,8,384], index: 0, kind: input, shape index: {}]
  %s1 = inlined_call_operand.vmem [shape: f32[128,384], index: 1, kind: input, shape index: {}]
  %s2 = inlined_call_operand.vmem [shape: f32[1,384], index: 2, kind: input, shape index: {}]
  %s3 = inlined_call_operand.vmem [shape: f32[4,8,128], index: 3, kind: output, shape index: {}]
  %s4 = sld [smem:[#allocation0]]
  $region22: #{gru4rec_forward.4} parent=0
    _
  %s6 = ssub.s32 1, %s4
  %s7 = scalar_select 0, %s6, %s4
  // Predicated region
  $region2: #{gru4rec_forward.4} parent=0 // pred_check
    _
  $region3: #{gru4rec_forward.4} parent=0 // pred_check_branch
    %9 = sbr.rel (0) target = $region5
  $region4: #{gru4rec_forward.4} parent=0 // pred_region
    _
  $region5: #{gru4rec_forward.4} parent=0 // pred_fallthru
    _
  // Predicated region
  $region6: #{gru4rec_forward.4} parent=0 // pred_check
    _
  $region7: #{gru4rec_forward.4} parent=0 // pred_check_branch
    %11 = sbr.rel (0) target = $region9
  $region8: #{gru4rec_forward.4} parent=0 // pred_region
    _
  $region9: #{gru4rec_forward.4} parent=0 // pred_fallthru
    _
  // Predicated region
  $region10: #{gru4rec_forward.4} parent=0 // pred_check
    _
  $region11: #{gru4rec_forward.4} parent=0 // pred_check_branch
    %13 = sbr.rel (0) target = $region13
  $region12: #{gru4rec_forward.4} parent=0 // pred_region
    _
  $region13: #{gru4rec_forward.4} parent=0 // pred_fallthru
    _
  %v14 = vld [vmem:[%s1] sm:$0xff]
  %v15 = vld [vmem:[%s1 + $0x8] sm:$0xff]
  %v16 = vld [vmem:[%s1 + $0x10] sm:$0xff]
  %v17 = vld [vmem:[%s1 + $0x18] sm:$0xff]
  %v18 = vld [vmem:[%s1 + $0x20] sm:$0xff]
  %v19 = vld [vmem:[%s1 + $0x28] sm:$0xff]
  %v20 = vld [vmem:[%s1 + $0x30] sm:$0xff]
  %v21 = vld [vmem:[%s1 + $0x38] sm:$0xff]
  %v22 = vld [vmem:[%s1 + $0x40] sm:$0xff]
  %v23 = vld [vmem:[%s1 + $0x48] sm:$0xff]
  %v24 = vld [vmem:[%s1 + $0x50] sm:$0xff]
  %v25 = vld [vmem:[%s1 + $0x58] sm:$0xff]
  %v26 = vld [vmem:[%s1 + $0x60] sm:$0xff]
  %v27 = vld [vmem:[%s1 + $0x68] sm:$0xff]
  %v28 = vld [vmem:[%s1 + $0x70] sm:$0xff]
  %v29 = vld [vmem:[%s1 + $0x78] sm:$0xff]
  %v30 = vld [vmem:[%s1 + $0x80] sm:$0xff]
  %v31 = vld [vmem:[%s1 + $0x88] sm:$0xff]
  %v32 = vld [vmem:[%s1 + $0x90] sm:$0xff]
  %v33 = vld [vmem:[%s1 + $0x98] sm:$0xff]
  %v34 = vld [vmem:[%s1 + $0xa0] sm:$0xff]
  %v35 = vld [vmem:[%s1 + $0xa8] sm:$0xff]
  %v36 = vld [vmem:[%s1 + $0xb0] sm:$0xff]
  %v37 = vld [vmem:[%s1 + $0xb8] sm:$0xff]
  %v38 = vld [vmem:[%s1 + $0xc0] sm:$0xff]
  %v39 = vld [vmem:[%s1 + $0xc8] sm:$0xff]
  %v40 = vld [vmem:[%s1 + $0xd0] sm:$0xff]
  %v41 = vld [vmem:[%s1 + $0xd8] sm:$0xff]
  %v42 = vld [vmem:[%s1 + $0xe0] sm:$0xff]
  %v43 = vld [vmem:[%s1 + $0xe8] sm:$0xff]
  %v44 = vld [vmem:[%s1 + $0xf0] sm:$0xff]
  %v45 = vld [vmem:[%s1 + $0xf8] sm:$0xff]
  %v46 = vld [vmem:[%s1 + $0x100] sm:$0xff]
  %v47 = vld [vmem:[%s1 + $0x108] sm:$0xff]
  %v48 = vld [vmem:[%s1 + $0x110] sm:$0xff]
  %v49 = vld [vmem:[%s1 + $0x118] sm:$0xff]
  %v50 = vld [vmem:[%s1 + $0x120] sm:$0xff]
  %v51 = vld [vmem:[%s1 + $0x128] sm:$0xff]
  %v52 = vld [vmem:[%s1 + $0x130] sm:$0xff]
  %v53 = vld [vmem:[%s1 + $0x138] sm:$0xff]
  %v54 = vld [vmem:[%s1 + $0x140] sm:$0xff]
  %v55 = vld [vmem:[%s1 + $0x148] sm:$0xff]
  %v56 = vld [vmem:[%s1 + $0x150] sm:$0xff]
  %v57 = vld [vmem:[%s1 + $0x158] sm:$0xff]
  %v58 = vld [vmem:[%s1 + $0x160] sm:$0xff]
  %v59 = vld [vmem:[%s1 + $0x168] sm:$0xff]
  %v60 = vld [vmem:[%s1 + $0x170] sm:$0xff]
  %v61 = vld [vmem:[%s1 + $0x178] sm:$0xff]
  %v62 = vld [vmem:[%s2] sm:$0x7]
  %v63 = vld [vmem:[%s0] sm:$0xff]
  %v64 = vld [vmem:[%s0 + $0x8] sm:$0xff]
  %v65 = vld [vmem:[%s0 + $0x10] sm:$0xff]
  %v67 = vlaneseq
  %v68 = vshrl.u32 %v67, 7
  %v69 = vsub.s32 0, %v68
  %v70 = vrot.slane %v62, %v69
  %v71 = vlaneseq
  %v72 = vshrl.u32 %v71, 7
  %v73 = vsub.s32 1, %v72
  %v74 = vrot.slane %v62, %v73
  %v75 = vlaneseq
  %v76 = vshrl.u32 %v75, 7
  %v77 = vsub.s32 2, %v76
  %v78 = vrot.slane %v62, %v77
  %82 = vmatprep.subr.mxu0 %v15
  %83 = vmatpush1.msra.mxu0 %v14
  %84 = vmatprep.subr.mxu0 %v18
  %85 = vmatpush1.msra.mxu0 %v17
  %86 = vmatprep.subr.mxu0 %v21
  %87 = vmatpush1.msra.mxu0 %v20
  %88 = vmatprep.subr.mxu0 %v24
  %89 = vmatpush1.msra.mxu0 %v23
  %90 = vmatprep.subr.mxu0 %v27
  %91 = vmatpush1.msra.mxu0 %v26
  %92 = vmatprep.subr.mxu0 %v30
  %93 = vmatpush1.msra.mxu0 %v29
  %94 = vmatprep.subr.mxu0 %v33
  %95 = vmatpush1.msra.mxu0 %v32
  %96 = vmatprep.subr.mxu0 %v36
  %97 = vmatpush1.msra.mxu0 %v35
  %98 = vmatprep.subr.mxu0 %v39
  %99 = vmatpush1.msra.mxu0 %v38
  %100 = vmatprep.subr.mxu0 %v42
  %101 = vmatpush1.msra.mxu0 %v41
  %102 = vmatprep.subr.mxu0 %v45
  %103 = vmatpush1.msra.mxu0 %v44
  %104 = vmatprep.subr.mxu0 %v48
  %105 = vmatpush1.msra.mxu0 %v47
  %106 = vmatprep.subr.mxu0 %v51
  %107 = vmatpush1.msra.mxu0 %v50
  %108 = vmatprep.subr.mxu0 %v54
  %109 = vmatpush1.msra.mxu0 %v53
  %110 = vmatprep.subr.mxu0 %v57
  %111 = vmatpush1.msra.mxu0 %v56
  %112 = vmatprep.subr.mxu0 %v60
  %113 = vmatpush1.msra.mxu0 %v59
  %114 = vmatprep.subr.mxu0 0.0
  %115 = vmatpush1.msra.mxu0 0.0
  %116 = vmatprep.subr.mxu0 0.0
  %117 = vmatpush1.msra.mxu0 0.0
  %118 = vmatprep.subr.mxu0 0.0
  %119 = vmatpush1.msra.mxu0 0.0
  %120 = vmatprep.subr.mxu0 0.0
  %121 = vmatpush1.msra.mxu0 0.0
  %122 = vmatprep.subr.mxu0 0.0
  %123 = vmatpush1.msra.mxu0 0.0
  %124 = vmatprep.subr.mxu0 0.0
  %125 = vmatpush1.msra.mxu0 0.0
  %126 = vmatprep.subr.mxu0 0.0
  %127 = vmatpush1.msra.mxu0 0.0
  %128 = vmatprep.subr.mxu0 0.0
  %129 = vmatpush1.msra.mxu0 0.0
  %130 = vmatprep.subr.mxu0 0.0
  %131 = vmatpush1.msra.mxu0 0.0
  %132 = vmatprep.subr.mxu0 0.0
  %133 = vmatpush1.msra.mxu0 0.0
  %134 = vmatprep.subr.mxu0 0.0
  %135 = vmatpush1.msra.mxu0 0.0
  %136 = vmatprep.subr.mxu0 0.0
  %137 = vmatpush1.msra.mxu0 0.0
  %138 = vmatprep.subr.mxu0 0.0
  %139 = vmatpush1.msra.mxu0 0.0
  %140 = vmatprep.subr.mxu0 0.0
  %141 = vmatpush1.msra.mxu0 0.0
  %142 = vmatprep.subr.mxu0 0.0
  %143 = vmatpush1.msra.mxu0 0.0
  %144 = vmatprep.subr.mxu0 0.0
  %145 = vmatpush1.msra.mxu0 0.0
  %146 = vmatprep.mubr.f32.mxu0 0.0
  %147 = vmatmul.mubr.f32.gmra.mrb[0].mxu0 0.0
  %v148 = vpop.f32.mrb[0].mxu0
  %v149 = vadd.f32 %v70, %v148
  %v150 = vpop.f32.mrb[0].mxu0
  %v151 = vadd.f32 %v74, %v150
  %152 = vdwg.mxu0
  %153 = vmatprep.subr.mxu0 0.0
  %154 = vmatpush1.msra.mxu0 %v16
  %155 = vmatprep.subr.mxu0 0.0
  %156 = vmatpush1.msra.mxu0 %v19
  %157 = vmatprep.subr.mxu0 0.0
  %158 = vmatpush1.msra.mxu0 %v22
  %159 = vmatprep.subr.mxu0 0.0
  %160 = vmatpush1.msra.mxu0 %v25
  %161 = vmatprep.subr.mxu0 0.0
  %162 = vmatpush1.msra.mxu0 %v28
  %163 = vmatprep.subr.mxu0 0.0
  %164 = vmatpush1.msra.mxu0 %v31
  %165 = vmatprep.subr.mxu0 0.0
  %166 = vmatpush1.msra.mxu0 %v34
  %167 = vmatprep.subr.mxu0 0.0
  %168 = vmatpush1.msra.mxu0 %v37
  %169 = vmatprep.subr.mxu0 0.0
  %170 = vmatpush1.msra.mxu0 %v40
  %171 = vmatprep.subr.mxu0 0.0
  %172 = vmatpush1.msra.mxu0 %v43
  %173 = vmatprep.subr.mxu0 0.0
  %174 = vmatpush1.msra.mxu0 %v46
  %175 = vmatprep.subr.mxu0 0.0
  %176 = vmatpush1.msra.mxu0 %v49
  %177 = vmatprep.subr.mxu0 0.0
  %178 = vmatpush1.msra.mxu0 %v52
  %179 = vmatprep.subr.mxu0 0.0
  %180 = vmatpush1.msra.mxu0 %v55
  %181 = vmatprep.subr.mxu0 0.0
  %182 = vmatpush1.msra.mxu0 %v58
  %183 = vmatprep.subr.mxu0 0.0
  %184 = vmatpush1.msra.mxu0 %v61
  %185 = vmatprep.subr.mxu0 0.0
  %186 = vmatpush1.msra.mxu0 0.0
  %187 = vmatprep.subr.mxu0 0.0
  %188 = vmatpush1.msra.mxu0 0.0
  %189 = vmatprep.subr.mxu0 0.0
  %190 = vmatpush1.msra.mxu0 0.0
  %191 = vmatprep.subr.mxu0 0.0
  %192 = vmatpush1.msra.mxu0 0.0
  %193 = vmatprep.subr.mxu0 0.0
  %194 = vmatpush1.msra.mxu0 0.0
  %195 = vmatprep.subr.mxu0 0.0
  %196 = vmatpush1.msra.mxu0 0.0
  %197 = vmatprep.subr.mxu0 0.0
  %198 = vmatpush1.msra.mxu0 0.0
  %199 = vmatprep.subr.mxu0 0.0
  %200 = vmatpush1.msra.mxu0 0.0
  %201 = vmatprep.subr.mxu0 0.0
  %202 = vmatpush1.msra.mxu0 0.0
  %203 = vmatprep.subr.mxu0 0.0
  %204 = vmatpush1.msra.mxu0 0.0
  %205 = vmatprep.subr.mxu0 0.0
  %206 = vmatpush1.msra.mxu0 0.0
  %207 = vmatprep.subr.mxu0 0.0
  %208 = vmatpush1.msra.mxu0 0.0
  %209 = vmatprep.subr.mxu0 0.0
  %210 = vmatpush1.msra.mxu0 0.0
  %211 = vmatprep.subr.mxu0 0.0
  %212 = vmatpush1.msra.mxu0 0.0
  %213 = vmatprep.subr.mxu0 0.0
  %214 = vmatpush1.msra.mxu0 0.0
  %215 = vmatprep.subr.mxu0 0.0
  %216 = vmatpush1.msra.mxu0 0.0
  %217 = vmatprep.mubr.f32.mxu0 0.0
  %218 = vmatmul.mubr.f32.gmra.mrb[0].mxu0 0.0
  %v219 = vpop.f32.mrb[0].mxu0
  %v220 = vadd.f32 %v78, %v219
  %v221 = vpop.f32.mrb[0].mxu0
  %222 = vdwg.mxu0
  %v223 = vadd.f32 %v63, %v149
  %v224 = vxor.u32 %v223, 2147483648
  %v225 = vmul.f32 %v224, 1.442695
  %v226 = vpow.pop %v225
  %v227 = vadd.f32 %v226, 1.0
  %v228 = vrcp.pop %v227
  %v229 = vmul.f32 1.0, %v228
  %v230 = vadd.f32 %v64, %v151
  %v231 = vxor.u32 %v230, 2147483648
  %v232 = vmul.f32 %v231, 1.442695
  %v233 = vpow.pop %v232
  %v234 = vadd.f32 %v233, 1.0
  %v235 = vrcp.pop %v234
  %v236 = vmul.f32 1.0, %v235
  %v237 = vmul.f32 %v229, %v220
  %v238 = vadd.f32 %v65, %v237
  %v239 = vtanh.pop %v238
  %v240 = vsub.f32 1.0, %v236
  %v241 = vmul.f32 %v240, %v239
  %v242 = vmul.f32 %v236, 0.0
  %v243 = vadd.f32 %v241, %v242
  %244 = vst [vmem:[#allocation2] sm:$0xff] %v243
  %s245 = scalar_lea.vmem %s0, 24
  %v246 = vld [vmem:[%s245] sm:$0xff]
  %v247 = vld [vmem:[%s245 + $0x8] sm:$0xff]
  %v248 = vld [vmem:[%s245 + $0x10] sm:$0xff]
  %249 = vmatprep.subr.mxu0 %v15
  %250 = vmatpush1.msra.mxu0 %v14
  %251 = vmatprep.subr.mxu0 %v18
  %252 = vmatpush1.msra.mxu0 %v17
  %253 = vmatprep.subr.mxu0 %v21
  %254 = vmatpush1.msra.mxu0 %v20
  %255 = vmatprep.subr.mxu0 %v24
  %256 = vmatpush1.msra.mxu0 %v23
  %257 = vmatprep.subr.mxu0 %v27
  %258 = vmatpush1.msra.mxu0 %v26
  %259 = vmatprep.subr.mxu0 %v30
  %260 = vmatpush1.msra.mxu0 %v29
  %261 = vmatprep.subr.mxu0 %v33
  %262 = vmatpush1.msra.mxu0 %v32
  %263 = vmatprep.subr.mxu0 %v36
  %264 = vmatpush1.msra.mxu0 %v35
  %265 = vmatprep.subr.mxu0 %v39
  %266 = vmatpush1.msra.mxu0 %v38
  %267 = vmatprep.subr.mxu0 %v42
  %268 = vmatpush1.msra.mxu0 %v41
  %269 = vmatprep.subr.mxu0 %v45
  %270 = vmatpush1.msra.mxu0 %v44
  %271 = vmatprep.subr.mxu0 %v48
  %272 = vmatpush1.msra.mxu0 %v47
  %273 = vmatprep.subr.mxu0 %v51
  %274 = vmatpush1.msra.mxu0 %v50
  %275 = vmatprep.subr.mxu0 %v54
  %276 = vmatpush1.msra.mxu0 %v53
  %277 = vmatprep.subr.mxu0 %v57
  %278 = vmatpush1.msra.mxu0 %v56
  %279 = vmatprep.subr.mxu0 %v60
  %280 = vmatpush1.msra.mxu0 %v59
  %281 = vmatprep.subr.mxu0 0.0
  %282 = vmatpush1.msra.mxu0 0.0
  %283 = vmatprep.subr.mxu0 0.0
  %284 = vmatpush1.msra.mxu0 0.0
  %285 = vmatprep.subr.mxu0 0.0
  %286 = vmatpush1.msra.mxu0 0.0
  %287 = vmatprep.subr.mxu0 0.0
  %288 = vmatpush1.msra.mxu0 0.0
  %289 = vmatprep.subr.mxu0 0.0
  %290 = vmatpush1.msra.mxu0 0.0
  %291 = vmatprep.subr.mxu0 0.0
  %292 = vmatpush1.msra.mxu0 0.0
  %293 = vmatprep.subr.mxu0 0.0
  %294 = vmatpush1.msra.mxu0 0.0
  %295 = vmatprep.subr.mxu0 0.0
  %296 = vmatpush1.msra.mxu0 0.0
  %297 = vmatprep.subr.mxu0 0.0
  %298 = vmatpush1.msra.mxu0 0.0
  %299 = vmatprep.subr.mxu0 0.0
  %300 = vmatpush1.msra.mxu0 0.0
  %301 = vmatprep.subr.mxu0 0.0
  %302 = vmatpush1.msra.mxu0 0.0
  %303 = vmatprep.subr.mxu0 0.0
  %304 = vmatpush1.msra.mxu0 0.0
  %305 = vmatprep.subr.mxu0 0.0
  %306 = vmatpush1.msra.mxu0 0.0
  %307 = vmatprep.subr.mxu0 0.0
  %308 = vmatpush1.msra.mxu0 0.0
  %309 = vmatprep.subr.mxu0 0.0
  %310 = vmatpush1.msra.mxu0 0.0
  %311 = vmatprep.subr.mxu0 0.0
  %312 = vmatpush1.msra.mxu0 0.0
  %313 = vmatprep.mubr.f32.mxu0 0.0
  %314 = vmatmul.mubr.f32.gmra.mrb[0].mxu0 %v243
  %v315 = vpop.f32.mrb[0].mxu0
  %v316 = vadd.f32 %v70, %v315
  %v317 = vpop.f32.mrb[0].mxu0
  %v318 = vadd.f32 %v74, %v317
  %319 = vdwg.mxu0
  %320 = vmatprep.subr.mxu0 0.0
  %321 = vmatpush1.msra.mxu0 %v16
  %322 = vmatprep.subr.mxu0 0.0
  %323 = vmatpush1.msra.mxu0 %v19
  %324 = vmatprep.subr.mxu0 0.0
  %325 = vmatpush1.msra.mxu0 %v22
  %326 = vmatprep.subr.mxu0 0.0
  %327 = vmatpush1.msra.mxu0 %v25
  %328 = vmatprep.subr.mxu0 0.0
  %329 = vmatpush1.msra.mxu0 %v28
  %330 = vmatprep.subr.mxu0 0.0
  %331 = vmatpush1.msra.mxu0 %v31
  %332 = vmatprep.subr.mxu0 0.0
  %333 = vmatpush1.msra.mxu0 %v34
  %334 = vmatprep.subr.mxu0 0.0
  %335 = vmatpush1.msra.mxu0 %v37
  %336 = vmatprep.subr.mxu0 0.0
  %337 = vmatpush1.msra.mxu0 %v40
  %338 = vmatprep.subr.mxu0 0.0
  %339 = vmatpush1.msra.mxu0 %v43
  %340 = vmatprep.subr.mxu0 0.0
  %341 = vmatpush1.msra.mxu0 %v46
  %342 = vmatprep.subr.mxu0 0.0
  %343 = vmatpush1.msra.mxu0 %v49
  %344 = vmatprep.subr.mxu0 0.0
  %345 = vmatpush1.msra.mxu0 %v52
  %346 = vmatprep.subr.mxu0 0.0
  %347 = vmatpush1.msra.mxu0 %v55
  %348 = vmatprep.subr.mxu0 0.0
  %349 = vmatpush1.msra.mxu0 %v58
  %350 = vmatprep.subr.mxu0 0.0
  %351 = vmatpush1.msra.mxu0 %v61
  %352 = vmatprep.subr.mxu0 0.0
  %353 = vmatpush1.msra.mxu0 0.0
  %354 = vmatprep.subr.mxu0 0.0
  %355 = vmatpush1.msra.mxu0 0.0
  %356 = vmatprep.subr.mxu0 0.0
  %357 = vmatpush1.msra.mxu0 0.0
  %358 = vmatprep.subr.mxu0 0.0
  %359 = vmatpush1.msra.mxu0 0.0
  %360 = vmatprep.subr.mxu0 0.0
  %361 = vmatpush1.msra.mxu0 0.0
  %362 = vmatprep.subr.mxu0 0.0
  %363 = vmatpush1.msra.mxu0 0.0
  %364 = vmatprep.subr.mxu0 0.0
  %365 = vmatpush1.msra.mxu0 0.0
  %366 = vmatprep.subr.mxu0 0.0
  %367 = vmatpush1.msra.mxu0 0.0
  %368 = vmatprep.subr.mxu0 0.0
  %369 = vmatpush1.msra.mxu0 0.0
  %370 = vmatprep.subr.mxu0 0.0
  %371 = vmatpush1.msra.mxu0 0.0
  %372 = vmatprep.subr.mxu0 0.0
  %373 = vmatpush1.msra.mxu0 0.0
  %374 = vmatprep.subr.mxu0 0.0
  %375 = vmatpush1.msra.mxu0 0.0
  %376 = vmatprep.subr.mxu0 0.0
  %377 = vmatpush1.msra.mxu0 0.0
  %378 = vmatprep.subr.mxu0 0.0
  %379 = vmatpush1.msra.mxu0 0.0
  %380 = vmatprep.subr.mxu0 0.0
  %381 = vmatpush1.msra.mxu0 0.0
  %382 = vmatprep.subr.mxu0 0.0
  %383 = vmatpush1.msra.mxu0 0.0
  %384 = vmatprep.mubr.f32.mxu0 0.0
  %385 = vmatmul.mubr.f32.gmra.mrb[0].mxu0 %v243
  %v386 = vpop.f32.mrb[0].mxu0
  %v387 = vadd.f32 %v78, %v386
  %v388 = vpop.f32.mrb[0].mxu0
  %389 = vdwg.mxu0
  %v390 = vadd.f32 %v246, %v316
  %v391 = vxor.u32 %v390, 2147483648
  %v392 = vmul.f32 %v391, 1.442695
  %v393 = vpow.pop %v392
  %v394 = vadd.f32 %v393, 1.0
  %v395 = vrcp.pop %v394
  %v396 = vmul.f32 1.0, %v395
  %v397 = vadd.f32 %v247, %v318
  %v398 = vxor.u32 %v397, 2147483648
  %v399 = vmul.f32 %v398, 1.442695
  %v400 = vpow.pop %v399
  %v401 = vadd.f32 %v400, 1.0
  %v402 = vrcp.pop %v401
  %v403 = vmul.f32 1.0, %v402
  %v404 = vmul.f32 %v396, %v387
  %v405 = vadd.f32 %v248, %v404
  %v406 = vtanh.pop %v405
  %v407 = vsub.f32 1.0, %v403
  %v408 = vmul.f32 %v407, %v406
  %v409 = vmul.f32 %v403, %v243
  %v410 = vadd.f32 %v408, %v409
  %s411 = scalar_lea.vmem [#allocation2], 8
  %412 = vst [vmem:[%s411] sm:$0xff] %v410
  %s413 = scalar_lea.vmem %s0, 48
  %v414 = vld [vmem:[%s413] sm:$0xff]
  %v415 = vld [vmem:[%s413 + $0x8] sm:$0xff]
  %v416 = vld [vmem:[%s413 + $0x10] sm:$0xff]
  %417 = vmatprep.subr.mxu0 %v15
  %418 = vmatpush1.msra.mxu0 %v14
  %419 = vmatprep.subr.mxu0 %v18
  %420 = vmatpush1.msra.mxu0 %v17
  %421 = vmatprep.subr.mxu0 %v21
  %422 = vmatpush1.msra.mxu0 %v20
  %423 = vmatprep.subr.mxu0 %v24
  %424 = vmatpush1.msra.mxu0 %v23
  %425 = vmatprep.subr.mxu0 %v27
  %426 = vmatpush1.msra.mxu0 %v26
  %427 = vmatprep.subr.mxu0 %v30
  %428 = vmatpush1.msra.mxu0 %v29
  %429 = vmatprep.subr.mxu0 %v33
  %430 = vmatpush1.msra.mxu0 %v32
  %431 = vmatprep.subr.mxu0 %v36
  %432 = vmatpush1.msra.mxu0 %v35
  %433 = vmatprep.subr.mxu0 %v39
  %434 = vmatpush1.msra.mxu0 %v38
  %435 = vmatprep.subr.mxu0 %v42
  %436 = vmatpush1.msra.mxu0 %v41
  %437 = vmatprep.subr.mxu0 %v45
  %438 = vmatpush1.msra.mxu0 %v44
  %439 = vmatprep.subr.mxu0 %v48
  %440 = vmatpush1.msra.mxu0 %v47
  %441 = vmatprep.subr.mxu0 %v51
  %442 = vmatpush1.msra.mxu0 %v50
  %443 = vmatprep.subr.mxu0 %v54
  %444 = vmatpush1.msra.mxu0 %v53
  %445 = vmatprep.subr.mxu0 %v57
  %446 = vmatpush1.msra.mxu0 %v56
  %447 = vmatprep.subr.mxu0 %v60
  %448 = vmatpush1.msra.mxu0 %v59
  %449 = vmatprep.subr.mxu0 0.0
  %450 = vmatpush1.msra.mxu0 0.0
  %451 = vmatprep.subr.mxu0 0.0
  %452 = vmatpush1.msra.mxu0 0.0
  %453 = vmatprep.subr.mxu0 0.0
  %454 = vmatpush1.msra.mxu0 0.0
  %455 = vmatprep.subr.mxu0 0.0
  %456 = vmatpush1.msra.mxu0 0.0
  %457 = vmatprep.subr.mxu0 0.0
  %458 = vmatpush1.msra.mxu0 0.0
  %459 = vmatprep.subr.mxu0 0.0
  %460 = vmatpush1.msra.mxu0 0.0
  %461 = vmatprep.subr.mxu0 0.0
  %462 = vmatpush1.msra.mxu0 0.0
  %463 = vmatprep.subr.mxu0 0.0
  %464 = vmatpush1.msra.mxu0 0.0
  %465 = vmatprep.subr.mxu0 0.0
  %466 = vmatpush1.msra.mxu0 0.0
  %467 = vmatprep.subr.mxu0 0.0
  %468 = vmatpush1.msra.mxu0 0.0
  %469 = vmatprep.subr.mxu0 0.0
  %470 = vmatpush1.msra.mxu0 0.0
  %471 = vmatprep.subr.mxu0 0.0
  %472 = vmatpush1.msra.mxu0 0.0
  %473 = vmatprep.subr.mxu0 0.0
  %474 = vmatpush1.msra.mxu0 0.0
  %475 = vmatprep.subr.mxu0 0.0
  %476 = vmatpush1.msra.mxu0 0.0
  %477 = vmatprep.subr.mxu0 0.0
  %478 = vmatpush1.msra.mxu0 0.0
  %479 = vmatprep.subr.mxu0 0.0
  %480 = vmatpush1.msra.mxu0 0.0
  %481 = vmatprep.mubr.f32.mxu0 0.0
  %482 = vmatmul.mubr.f32.gmra.mrb[0].mxu0 %v410
  %v483 = vpop.f32.mrb[0].mxu0
  %v484 = vadd.f32 %v70, %v483
  %v485 = vpop.f32.mrb[0].mxu0
  %v486 = vadd.f32 %v74, %v485
  %487 = vdwg.mxu0
  %488 = vmatprep.subr.mxu0 0.0
  %489 = vmatpush1.msra.mxu0 %v16
  %490 = vmatprep.subr.mxu0 0.0
  %491 = vmatpush1.msra.mxu0 %v19
  %492 = vmatprep.subr.mxu0 0.0
  %493 = vmatpush1.msra.mxu0 %v22
  %494 = vmatprep.subr.mxu0 0.0
  %495 = vmatpush1.msra.mxu0 %v25
  %496 = vmatprep.subr.mxu0 0.0
  %497 = vmatpush1.msra.mxu0 %v28
  %498 = vmatprep.subr.mxu0 0.0
  %499 = vmatpush1.msra.mxu0 %v31
  %500 = vmatprep.subr.mxu0 0.0
  %501 = vmatpush1.msra.mxu0 %v34
  %502 = vmatprep.subr.mxu0 0.0
  %503 = vmatpush1.msra.mxu0 %v37
  %504 = vmatprep.subr.mxu0 0.0
  %505 = vmatpush1.msra.mxu0 %v40
  %506 = vmatprep.subr.mxu0 0.0
  %507 = vmatpush1.msra.mxu0 %v43
  %508 = vmatprep.subr.mxu0 0.0
  %509 = vmatpush1.msra.mxu0 %v46
  %510 = vmatprep.subr.mxu0 0.0
  %511 = vmatpush1.msra.mxu0 %v49
  %512 = vmatprep.subr.mxu0 0.0
  %513 = vmatpush1.msra.mxu0 %v52
  %514 = vmatprep.subr.mxu0 0.0
  %515 = vmatpush1.msra.mxu0 %v55
  %516 = vmatprep.subr.mxu0 0.0
  %517 = vmatpush1.msra.mxu0 %v58
  %518 = vmatprep.subr.mxu0 0.0
  %519 = vmatpush1.msra.mxu0 %v61
  %520 = vmatprep.subr.mxu0 0.0
  %521 = vmatpush1.msra.mxu0 0.0
  %522 = vmatprep.subr.mxu0 0.0
  %523 = vmatpush1.msra.mxu0 0.0
  %524 = vmatprep.subr.mxu0 0.0
  %525 = vmatpush1.msra.mxu0 0.0
  %526 = vmatprep.subr.mxu0 0.0
  %527 = vmatpush1.msra.mxu0 0.0
  %528 = vmatprep.subr.mxu0 0.0
  %529 = vmatpush1.msra.mxu0 0.0
  %530 = vmatprep.subr.mxu0 0.0
  %531 = vmatpush1.msra.mxu0 0.0
  %532 = vmatprep.subr.mxu0 0.0
  %533 = vmatpush1.msra.mxu0 0.0
  %534 = vmatprep.subr.mxu0 0.0
  %535 = vmatpush1.msra.mxu0 0.0
  %536 = vmatprep.subr.mxu0 0.0
  %537 = vmatpush1.msra.mxu0 0.0
  %538 = vmatprep.subr.mxu0 0.0
  %539 = vmatpush1.msra.mxu0 0.0
  %540 = vmatprep.subr.mxu0 0.0
  %541 = vmatpush1.msra.mxu0 0.0
  %542 = vmatprep.subr.mxu0 0.0
  %543 = vmatpush1.msra.mxu0 0.0
  %544 = vmatprep.subr.mxu0 0.0
  %545 = vmatpush1.msra.mxu0 0.0
  %546 = vmatprep.subr.mxu0 0.0
  %547 = vmatpush1.msra.mxu0 0.0
  %548 = vmatprep.subr.mxu0 0.0
  %549 = vmatpush1.msra.mxu0 0.0
  %550 = vmatprep.subr.mxu0 0.0
  %551 = vmatpush1.msra.mxu0 0.0
  %552 = vmatprep.mubr.f32.mxu0 0.0
  %553 = vmatmul.mubr.f32.gmra.mrb[0].mxu0 %v410
  %v554 = vpop.f32.mrb[0].mxu0
  %v555 = vadd.f32 %v78, %v554
  %v556 = vpop.f32.mrb[0].mxu0
  %557 = vdwg.mxu0
  %v558 = vadd.f32 %v414, %v484
  %v559 = vxor.u32 %v558, 2147483648
  %v560 = vmul.f32 %v559, 1.442695
  %v561 = vpow.pop %v560
  %v562 = vadd.f32 %v561, 1.0
  %v563 = vrcp.pop %v562
  %v564 = vmul.f32 1.0, %v563
  %v565 = vadd.f32 %v415, %v486
  %v566 = vxor.u32 %v565, 2147483648
  %v567 = vmul.f32 %v566, 1.442695
  %v568 = vpow.pop %v567
  %v569 = vadd.f32 %v568, 1.0
  %v570 = vrcp.pop %v569
  %v571 = vmul.f32 1.0, %v570
  %v572 = vmul.f32 %v564, %v555
  %v573 = vadd.f32 %v416, %v572
  %v574 = vtanh.pop %v573
  %v575 = vsub.f32 1.0, %v571
  %v576 = vmul.f32 %v575, %v574
  %v577 = vmul.f32 %v571, %v410
  %v578 = vadd.f32 %v576, %v577
  %s579 = scalar_lea.vmem [#allocation2], 16
  %580 = vst [vmem:[%s579] sm:$0xff] %v578
  %s581 = scalar_lea.vmem %s0, 72
  %v582 = vld [vmem:[%s581] sm:$0xff]
  %v583 = vld [vmem:[%s581 + $0x8] sm:$0xff]
  %v584 = vld [vmem:[%s581 + $0x10] sm:$0xff]
  %585 = vmatprep.subr.mxu0 %v15
  %586 = vmatpush1.msra.mxu0 %v14
  %587 = vmatprep.subr.mxu0 %v18
  %588 = vmatpush1.msra.mxu0 %v17
  %589 = vmatprep.subr.mxu0 %v21
  %590 = vmatpush1.msra.mxu0 %v20
  %591 = vmatprep.subr.mxu0 %v24
  %592 = vmatpush1.msra.mxu0 %v23
  %593 = vmatprep.subr.mxu0 %v27
  %594 = vmatpush1.msra.mxu0 %v26
  %595 = vmatprep.subr.mxu0 %v30
  %596 = vmatpush1.msra.mxu0 %v29
  %597 = vmatprep.subr.mxu0 %v33
  %598 = vmatpush1.msra.mxu0 %v32
  %599 = vmatprep.subr.mxu0 %v36
  %600 = vmatpush1.msra.mxu0 %v35
  %601 = vmatprep.subr.mxu0 %v39
  %602 = vmatpush1.msra.mxu0 %v38
  %603 = vmatprep.subr.mxu0 %v42
  %604 = vmatpush1.msra.mxu0 %v41
  %605 = vmatprep.subr.mxu0 %v45
  %606 = vmatpush1.msra.mxu0 %v44
  %607 = vmatprep.subr.mxu0 %v48
  %608 = vmatpush1.msra.mxu0 %v47
  %609 = vmatprep.subr.mxu0 %v51
  %610 = vmatpush1.msra.mxu0 %v50
  %611 = vmatprep.subr.mxu0 %v54
  %612 = vmatpush1.msra.mxu0 %v53
  %613 = vmatprep.subr.mxu0 %v57
  %614 = vmatpush1.msra.mxu0 %v56
  %615 = vmatprep.subr.mxu0 %v60
  %616 = vmatpush1.msra.mxu0 %v59
  %617 = vmatprep.subr.mxu0 0.0
  %618 = vmatpush1.msra.mxu0 0.0
  %619 = vmatprep.subr.mxu0 0.0
  %620 = vmatpush1.msra.mxu0 0.0
  %621 = vmatprep.subr.mxu0 0.0
  %622 = vmatpush1.msra.mxu0 0.0
  %623 = vmatprep.subr.mxu0 0.0
  %624 = vmatpush1.msra.mxu0 0.0
  %625 = vmatprep.subr.mxu0 0.0
  %626 = vmatpush1.msra.mxu0 0.0
  %627 = vmatprep.subr.mxu0 0.0
  %628 = vmatpush1.msra.mxu0 0.0
  %629 = vmatprep.subr.mxu0 0.0
  %630 = vmatpush1.msra.mxu0 0.0
  %631 = vmatprep.subr.mxu0 0.0
  %632 = vmatpush1.msra.mxu0 0.0
  %633 = vmatprep.subr.mxu0 0.0
  %634 = vmatpush1.msra.mxu0 0.0
  %635 = vmatprep.subr.mxu0 0.0
  %636 = vmatpush1.msra.mxu0 0.0
  %637 = vmatprep.subr.mxu0 0.0
  %638 = vmatpush1.msra.mxu0 0.0
  %639 = vmatprep.subr.mxu0 0.0
  %640 = vmatpush1.msra.mxu0 0.0
  %641 = vmatprep.subr.mxu0 0.0
  %642 = vmatpush1.msra.mxu0 0.0
  %643 = vmatprep.subr.mxu0 0.0
  %644 = vmatpush1.msra.mxu0 0.0
  %645 = vmatprep.subr.mxu0 0.0
  %646 = vmatpush1.msra.mxu0 0.0
  %647 = vmatprep.subr.mxu0 0.0
  %648 = vmatpush1.msra.mxu0 0.0
  %649 = vmatprep.mubr.f32.mxu0 0.0
  %650 = vmatmul.mubr.f32.gmra.mrb[0].mxu0 %v578
  %v651 = vpop.f32.mrb[0].mxu0
  %v652 = vadd.f32 %v70, %v651
  %v653 = vpop.f32.mrb[0].mxu0
  %v654 = vadd.f32 %v74, %v653
  %655 = vdwg.mxu0
  %656 = vmatprep.subr.mxu0 0.0
  %657 = vmatpush1.msra.mxu0 %v16
  %658 = vmatprep.subr.mxu0 0.0
  %659 = vmatpush1.msra.mxu0 %v19
  %660 = vmatprep.subr.mxu0 0.0
  %661 = vmatpush1.msra.mxu0 %v22
  %662 = vmatprep.subr.mxu0 0.0
  %663 = vmatpush1.msra.mxu0 %v25
  %664 = vmatprep.subr.mxu0 0.0
  %665 = vmatpush1.msra.mxu0 %v28
  %666 = vmatprep.subr.mxu0 0.0
  %667 = vmatpush1.msra.mxu0 %v31
  %668 = vmatprep.subr.mxu0 0.0
  %669 = vmatpush1.msra.mxu0 %v34
  %670 = vmatprep.subr.mxu0 0.0
  %671 = vmatpush1.msra.mxu0 %v37
  %672 = vmatprep.subr.mxu0 0.0
  %673 = vmatpush1.msra.mxu0 %v40
  %674 = vmatprep.subr.mxu0 0.0
  %675 = vmatpush1.msra.mxu0 %v43
  %676 = vmatprep.subr.mxu0 0.0
  %677 = vmatpush1.msra.mxu0 %v46
  %678 = vmatprep.subr.mxu0 0.0
  %679 = vmatpush1.msra.mxu0 %v49
  %680 = vmatprep.subr.mxu0 0.0
  %681 = vmatpush1.msra.mxu0 %v52
  %682 = vmatprep.subr.mxu0 0.0
  %683 = vmatpush1.msra.mxu0 %v55
  %684 = vmatprep.subr.mxu0 0.0
  %685 = vmatpush1.msra.mxu0 %v58
  %686 = vmatprep.subr.mxu0 0.0
  %687 = vmatpush1.msra.mxu0 %v61
  %688 = vmatprep.subr.mxu0 0.0
  %689 = vmatpush1.msra.mxu0 0.0
  %690 = vmatprep.subr.mxu0 0.0
  %691 = vmatpush1.msra.mxu0 0.0
  %692 = vmatprep.subr.mxu0 0.0
  %693 = vmatpush1.msra.mxu0 0.0
  %694 = vmatprep.subr.mxu0 0.0
  %695 = vmatpush1.msra.mxu0 0.0
  %696 = vmatprep.subr.mxu0 0.0
  %697 = vmatpush1.msra.mxu0 0.0
  %698 = vmatprep.subr.mxu0 0.0
  %699 = vmatpush1.msra.mxu0 0.0
  %700 = vmatprep.subr.mxu0 0.0
  %701 = vmatpush1.msra.mxu0 0.0
  %702 = vmatprep.subr.mxu0 0.0
  %703 = vmatpush1.msra.mxu0 0.0
  %704 = vmatprep.subr.mxu0 0.0
  %705 = vmatpush1.msra.mxu0 0.0
  %706 = vmatprep.subr.mxu0 0.0
  %707 = vmatpush1.msra.mxu0 0.0
  %708 = vmatprep.subr.mxu0 0.0
  %709 = vmatpush1.msra.mxu0 0.0
  %710 = vmatprep.subr.mxu0 0.0
  %711 = vmatpush1.msra.mxu0 0.0
  %712 = vmatprep.subr.mxu0 0.0
  %713 = vmatpush1.msra.mxu0 0.0
  %714 = vmatprep.subr.mxu0 0.0
  %715 = vmatpush1.msra.mxu0 0.0
  %716 = vmatprep.subr.mxu0 0.0
  %717 = vmatpush1.msra.mxu0 0.0
  %718 = vmatprep.subr.mxu0 0.0
  %719 = vmatpush1.msra.mxu0 0.0
  %720 = vmatprep.mubr.f32.mxu0 0.0
  %721 = vmatmul.mubr.f32.gmra.mrb[0].mxu0 %v578
  %v722 = vpop.f32.mrb[0].mxu0
  %v723 = vadd.f32 %v78, %v722
  %v724 = vpop.f32.mrb[0].mxu0
  %725 = vdwg.mxu0
  %v726 = vadd.f32 %v582, %v652
  %v727 = vxor.u32 %v726, 2147483648
  %v728 = vmul.f32 %v727, 1.442695
  %v729 = vpow.pop %v728
  %v730 = vadd.f32 %v729, 1.0
  %v731 = vrcp.pop %v730
  %v732 = vmul.f32 1.0, %v731
  %v733 = vadd.f32 %v583, %v654
  %v734 = vxor.u32 %v733, 2147483648
  %v735 = vmul.f32 %v734, 1.442695
  %v736 = vpow.pop %v735
  %v737 = vadd.f32 %v736, 1.0
  %v738 = vrcp.pop %v737
  %v739 = vmul.f32 1.0, %v738
  %v740 = vmul.f32 %v732, %v723
  %v741 = vadd.f32 %v584, %v740
  %v742 = vtanh.pop %v741
  %v743 = vsub.f32 1.0, %v739
  %v744 = vmul.f32 %v743, %v742
  %v745 = vmul.f32 %v739, %v578
  %v746 = vadd.f32 %v744, %v745
  %s747 = scalar_lea.vmem [#allocation2], 24
  %748 = vst [vmem:[%s747] sm:$0xff] %v746
  %s749 = scalar_lea.vmem %s0, 96
  %v750 = vld [vmem:[%s749] sm:$0xff]
  %v751 = vld [vmem:[%s749 + $0x8] sm:$0xff]
  %v752 = vld [vmem:[%s749 + $0x10] sm:$0xff]
  %753 = vmatprep.subr.mxu0 %v15
  %754 = vmatpush1.msra.mxu0 %v14
  %755 = vmatprep.subr.mxu0 %v18
  %756 = vmatpush1.msra.mxu0 %v17
  %757 = vmatprep.subr.mxu0 %v21
  %758 = vmatpush1.msra.mxu0 %v20
  %759 = vmatprep.subr.mxu0 %v24
  %760 = vmatpush1.msra.mxu0 %v23
  %761 = vmatprep.subr.mxu0 %v27
  %762 = vmatpush1.msra.mxu0 %v26
  %763 = vmatprep.subr.mxu0 %v30
  %764 = vmatpush1.msra.mxu0 %v29
  %765 = vmatprep.subr.mxu0 %v33
  %766 = vmatpush1.msra.mxu0 %v32
  %767 = vmatprep.subr.mxu0 %v36
  %768 = vmatpush1.msra.mxu0 %v35
  %769 = vmatprep.subr.mxu0 %v39
  %770 = vmatpush1.msra.mxu0 %v38
  %771 = vmatprep.subr.mxu0 %v42
  %772 = vmatpush1.msra.mxu0 %v41
  %773 = vmatprep.subr.mxu0 %v45
  %774 = vmatpush1.msra.mxu0 %v44
  %775 = vmatprep.subr.mxu0 %v48
  %776 = vmatpush1.msra.mxu0 %v47
  %777 = vmatprep.subr.mxu0 %v51
  %778 = vmatpush1.msra.mxu0 %v50
  %779 = vmatprep.subr.mxu0 %v54
  %780 = vmatpush1.msra.mxu0 %v53
  %781 = vmatprep.subr.mxu0 %v57
  %782 = vmatpush1.msra.mxu0 %v56
  %783 = vmatprep.subr.mxu0 %v60
  %784 = vmatpush1.msra.mxu0 %v59
  %785 = vmatprep.subr.mxu0 0.0
  %786 = vmatpush1.msra.mxu0 0.0
  %787 = vmatprep.subr.mxu0 0.0
  %788 = vmatpush1.msra.mxu0 0.0
  %789 = vmatprep.subr.mxu0 0.0
  %790 = vmatpush1.msra.mxu0 0.0
  %791 = vmatprep.subr.mxu0 0.0
  %792 = vmatpush1.msra.mxu0 0.0
  %793 = vmatprep.subr.mxu0 0.0
  %794 = vmatpush1.msra.mxu0 0.0
  %795 = vmatprep.subr.mxu0 0.0
  %796 = vmatpush1.msra.mxu0 0.0
  %797 = vmatprep.subr.mxu0 0.0
  %798 = vmatpush1.msra.mxu0 0.0
  %799 = vmatprep.subr.mxu0 0.0
  %800 = vmatpush1.msra.mxu0 0.0
  %801 = vmatprep.subr.mxu0 0.0
  %802 = vmatpush1.msra.mxu0 0.0
  %803 = vmatprep.subr.mxu0 0.0
  %804 = vmatpush1.msra.mxu0 0.0
  %805 = vmatprep.subr.mxu0 0.0
  %806 = vmatpush1.msra.mxu0 0.0
  %807 = vmatprep.subr.mxu0 0.0
  %808 = vmatpush1.msra.mxu0 0.0
  %809 = vmatprep.subr.mxu0 0.0
  %810 = vmatpush1.msra.mxu0 0.0
  %811 = vmatprep.subr.mxu0 0.0
  %812 = vmatpush1.msra.mxu0 0.0
  %813 = vmatprep.subr.mxu0 0.0
  %814 = vmatpush1.msra.mxu0 0.0
  %815 = vmatprep.subr.mxu0 0.0
  %816 = vmatpush1.msra.mxu0 0.0
  %817 = vmatprep.mubr.f32.mxu0 0.0
  %818 = vmatmul.mubr.f32.gmra.mrb[0].mxu0 %v746
  %v819 = vpop.f32.mrb[0].mxu0
  %v820 = vadd.f32 %v70, %v819
  %v821 = vpop.f32.mrb[0].mxu0
  %v822 = vadd.f32 %v74, %v821
  %823 = vdwg.mxu0
  %824 = vmatprep.subr.mxu0 0.0
  %825 = vmatpush1.msra.mxu0 %v16
  %826 = vmatprep.subr.mxu0 0.0
  %827 = vmatpush1.msra.mxu0 %v19
  %828 = vmatprep.subr.mxu0 0.0
  %829 = vmatpush1.msra.mxu0 %v22
  %830 = vmatprep.subr.mxu0 0.0
  %831 = vmatpush1.msra.mxu0 %v25
  %832 = vmatprep.subr.mxu0 0.0
  %833 = vmatpush1.msra.mxu0 %v28
  %834 = vmatprep.subr.mxu0 0.0
  %835 = vmatpush1.msra.mxu0 %v31
  %836 = vmatprep.subr.mxu0 0.0
  %837 = vmatpush1.msra.mxu0 %v34
  %838 = vmatprep.subr.mxu0 0.0
  %839 = vmatpush1.msra.mxu0 %v37
  %840 = vmatprep.subr.mxu0 0.0
  %841 = vmatpush1.msra.mxu0 %v40
  %842 = vmatprep.subr.mxu0 0.0
  %843 = vmatpush1.msra.mxu0 %v43
  %844 = vmatprep.subr.mxu0 0.0
  %845 = vmatpush1.msra.mxu0 %v46
  %846 = vmatprep.subr.mxu0 0.0
  %847 = vmatpush1.msra.mxu0 %v49
  %848 = vmatprep.subr.mxu0 0.0
  %849 = vmatpush1.msra.mxu0 %v52
  %850 = vmatprep.subr.mxu0 0.0
  %851 = vmatpush1.msra.mxu0 %v55
  %852 = vmatprep.subr.mxu0 0.0
  %853 = vmatpush1.msra.mxu0 %v58
  %854 = vmatprep.subr.mxu0 0.0
  %855 = vmatpush1.msra.mxu0 %v61
  %856 = vmatprep.subr.mxu0 0.0
  %857 = vmatpush1.msra.mxu0 0.0
  %858 = vmatprep.subr.mxu0 0.0
  %859 = vmatpush1.msra.mxu0 0.0
  %860 = vmatprep.subr.mxu0 0.0
  %861 = vmatpush1.msra.mxu0 0.0
  %862 = vmatprep.subr.mxu0 0.0
  %863 = vmatpush1.msra.mxu0 0.0
  %864 = vmatprep.subr.mxu0 0.0
  %865 = vmatpush1.msra.mxu0 0.0
  %866 = vmatprep.subr.mxu0 0.0
  %867 = vmatpush1.msra.mxu0 0.0
  %868 = vmatprep.subr.mxu0 0.0
  %869 = vmatpush1.msra.mxu0 0.0
  %870 = vmatprep.subr.mxu0 0.0
  %871 = vmatpush1.msra.mxu0 0.0
  %872 = vmatprep.subr.mxu0 0.0
  %873 = vmatpush1.msra.mxu0 0.0
  %874 = vmatprep.subr.mxu0 0.0
  %875 = vmatpush1.msra.mxu0 0.0
  %876 = vmatprep.subr.mxu0 0.0
  %877 = vmatpush1.msra.mxu0 0.0
  %878 = vmatprep.subr.mxu0 0.0
  %879 = vmatpush1.msra.mxu0 0.0
  %880 = vmatprep.subr.mxu0 0.0
  %881 = vmatpush1.msra.mxu0 0.0
  %882 = vmatprep.subr.mxu0 0.0
  %883 = vmatpush1.msra.mxu0 0.0
  %884 = vmatprep.subr.mxu0 0.0
  %885 = vmatpush1.msra.mxu0 0.0
  %886 = vmatprep.subr.mxu0 0.0
  %887 = vmatpush1.msra.mxu0 0.0
  %888 = vmatprep.mubr.f32.mxu0 0.0
  %889 = vmatmul.mubr.f32.gmra.mrb[0].mxu0 %v746
  %v890 = vpop.f32.mrb[0].mxu0
  %v891 = vadd.f32 %v78, %v890
  %v892 = vpop.f32.mrb[0].mxu0
  %893 = vdwg.mxu0
  %v894 = vadd.f32 %v750, %v820
  %v895 = vxor.u32 %v894, 2147483648
  %v896 = vmul.f32 %v895, 1.442695
  %v897 = vpow.pop %v896
  %v898 = vadd.f32 %v897, 1.0
  %v899 = vrcp.pop %v898
  %v900 = vmul.f32 1.0, %v899
  %v901 = vadd.f32 %v751, %v822
  %v902 = vxor.u32 %v901, 2147483648
  %v903 = vmul.f32 %v902, 1.442695
  %v904 = vpow.pop %v903
  %v905 = vadd.f32 %v904, 1.0
  %v906 = vrcp.pop %v905
  %v907 = vmul.f32 1.0, %v906
  %v908 = vmul.f32 %v900, %v891
  %v909 = vadd.f32 %v752, %v908
  %v910 = vtanh.pop %v909
  %v911 = vsub.f32 1.0, %v907
  %v912 = vmul.f32 %v911, %v910
  %v913 = vmul.f32 %v907, %v746
  %v914 = vadd.f32 %v912, %v913
  %s915 = scalar_lea.vmem [#allocation2], 32
  %916 = vst [vmem:[%s915] sm:$0xff] %v914
  %s917 = scalar_lea.vmem %s0, 120
  %v918 = vld [vmem:[%s917] sm:$0xff]
  %v919 = vld [vmem:[%s917 + $0x8] sm:$0xff]
  %v920 = vld [vmem:[%s917 + $0x10] sm:$0xff]
  %921 = vmatprep.subr.mxu0 %v15
  %922 = vmatpush1.msra.mxu0 %v14
  %923 = vmatprep.subr.mxu0 %v18
  %924 = vmatpush1.msra.mxu0 %v17
  %925 = vmatprep.subr.mxu0 %v21
  %926 = vmatpush1.msra.mxu0 %v20
  %927 = vmatprep.subr.mxu0 %v24
  %928 = vmatpush1.msra.mxu0 %v23
  %929 = vmatprep.subr.mxu0 %v27
  %930 = vmatpush1.msra.mxu0 %v26
  %931 = vmatprep.subr.mxu0 %v30
  %932 = vmatpush1.msra.mxu0 %v29
  %933 = vmatprep.subr.mxu0 %v33
  %934 = vmatpush1.msra.mxu0 %v32
  %935 = vmatprep.subr.mxu0 %v36
  %936 = vmatpush1.msra.mxu0 %v35
  %937 = vmatprep.subr.mxu0 %v39
  %938 = vmatpush1.msra.mxu0 %v38
  %939 = vmatprep.subr.mxu0 %v42
  %940 = vmatpush1.msra.mxu0 %v41
  %941 = vmatprep.subr.mxu0 %v45
  %942 = vmatpush1.msra.mxu0 %v44
  %943 = vmatprep.subr.mxu0 %v48
  %944 = vmatpush1.msra.mxu0 %v47
  %945 = vmatprep.subr.mxu0 %v51
  %946 = vmatpush1.msra.mxu0 %v50
  %947 = vmatprep.subr.mxu0 %v54
  %948 = vmatpush1.msra.mxu0 %v53
  %949 = vmatprep.subr.mxu0 %v57
  %950 = vmatpush1.msra.mxu0 %v56
  %951 = vmatprep.subr.mxu0 %v60
  %952 = vmatpush1.msra.mxu0 %v59
  %953 = vmatprep.subr.mxu0 0.0
  %954 = vmatpush1.msra.mxu0 0.0
  %955 = vmatprep.subr.mxu0 0.0
  %956 = vmatpush1.msra.mxu0 0.0
  %957 = vmatprep.subr.mxu0 0.0
  %958 = vmatpush1.msra.mxu0 0.0
  %959 = vmatprep.subr.mxu0 0.0
  %960 = vmatpush1.msra.mxu0 0.0
  %961 = vmatprep.subr.mxu0 0.0
  %962 = vmatpush1.msra.mxu0 0.0
  %963 = vmatprep.subr.mxu0 0.0
  %964 = vmatpush1.msra.mxu0 0.0
  %965 = vmatprep.subr.mxu0 0.0
  %966 = vmatpush1.msra.mxu0 0.0
  %967 = vmatprep.subr.mxu0 0.0
  %968 = vmatpush1.msra.mxu0 0.0
  %969 = vmatprep.subr.mxu0 0.0
  %970 = vmatpush1.msra.mxu0 0.0
  %971 = vmatprep.subr.mxu0 0.0
  %972 = vmatpush1.msra.mxu0 0.0
  %973 = vmatprep.subr.mxu0 0.0
  %974 = vmatpush1.msra.mxu0 0.0
  %975 = vmatprep.subr.mxu0 0.0
  %976 = vmatpush1.msra.mxu0 0.0
  %977 = vmatprep.subr.mxu0 0.0
  %978 = vmatpush1.msra.mxu0 0.0
  %979 = vmatprep.subr.mxu0 0.0
  %980 = vmatpush1.msra.mxu0 0.0
  %981 = vmatprep.subr.mxu0 0.0
  %982 = vmatpush1.msra.mxu0 0.0
  %983 = vmatprep.subr.mxu0 0.0
  %984 = vmatpush1.msra.mxu0 0.0
  %985 = vmatprep.mubr.f32.mxu0 0.0
  %986 = vmatmul.mubr.f32.gmra.mrb[0].mxu0 %v914
  %v987 = vpop.f32.mrb[0].mxu0
  %v988 = vadd.f32 %v70, %v987
  %v989 = vpop.f32.mrb[0].mxu0
  %v990 = vadd.f32 %v74, %v989
  %991 = vdwg.mxu0
  %992 = vmatprep.subr.mxu0 0.0
  %993 = vmatpush1.msra.mxu0 %v16
  %994 = vmatprep.subr.mxu0 0.0
  %995 = vmatpush1.msra.mxu0 %v19
  %996 = vmatprep.subr.mxu0 0.0
  %997 = vmatpush1.msra.mxu0 %v22
  %998 = vmatprep.subr.mxu0 0.0
  %999 = vmatpush1.msra.mxu0 %v25
  %1000 = vmatprep.subr.mxu0 0.0
  %1001 = vmatpush1.msra.mxu0 %v28
  %1002 = vmatprep.subr.mxu0 0.0
  %1003 = vmatpush1.msra.mxu0 %v31
  %1004 = vmatprep.subr.mxu0 0.0
  %1005 = vmatpush1.msra.mxu0 %v34
  %1006 = vmatprep.subr.mxu0 0.0
  %1007 = vmatpush1.msra.mxu0 %v37
  %1008 = vmatprep.subr.mxu0 0.0
  %1009 = vmatpush1.msra.mxu0 %v40
  %1010 = vmatprep.subr.mxu0 0.0
  %1011 = vmatpush1.msra.mxu0 %v43
  %1012 = vmatprep.subr.mxu0 0.0
  %1013 = vmatpush1.msra.mxu0 %v46
  %1014 = vmatprep.subr.mxu0 0.0
  %1015 = vmatpush1.msra.mxu0 %v49
  %1016 = vmatprep.subr.mxu0 0.0
  %1017 = vmatpush1.msra.mxu0 %v52
  %1018 = vmatprep.subr.mxu0 0.0
  %1019 = vmatpush1.msra.mxu0 %v55
  %1020 = vmatprep.subr.mxu0 0.0
  %1021 = vmatpush1.msra.mxu0 %v58
  %1022 = vmatprep.subr.mxu0 0.0
  %1023 = vmatpush1.msra.mxu0 %v61
  %1024 = vmatprep.subr.mxu0 0.0
  %1025 = vmatpush1.msra.mxu0 0.0
  %1026 = vmatprep.subr.mxu0 0.0
  %1027 = vmatpush1.msra.mxu0 0.0
  %1028 = vmatprep.subr.mxu0 0.0
  %1029 = vmatpush1.msra.mxu0 0.0
  %1030 = vmatprep.subr.mxu0 0.0
  %1031 = vmatpush1.msra.mxu0 0.0
  %1032 = vmatprep.subr.mxu0 0.0
  %1033 = vmatpush1.msra.mxu0 0.0
  %1034 = vmatprep.subr.mxu0 0.0
  %1035 = vmatpush1.msra.mxu0 0.0
  %1036 = vmatprep.subr.mxu0 0.0
  %1037 = vmatpush1.msra.mxu0 0.0
  %1038 = vmatprep.subr.mxu0 0.0
  %1039 = vmatpush1.msra.mxu0 0.0
  %1040 = vmatprep.subr.mxu0 0.0
  %1041 = vmatpush1.msra.mxu0 0.0
  %1042 = vmatprep.subr.mxu0 0.0
  %1043 = vmatpush1.msra.mxu0 0.0
  %1044 = vmatprep.subr.mxu0 0.0
  %1045 = vmatpush1.msra.mxu0 0.0
  %1046 = vmatprep.subr.mxu0 0.0
  %1047 = vmatpush1.msra.mxu0 0.0
  %1048 = vmatprep.subr.mxu0 0.0
  %1049 = vmatpush1.msra.mxu0 0.0
  %1050 = vmatprep.subr.mxu0 0.0
  %1051 = vmatpush1.msra.mxu0 0.0
  %1052 = vmatprep.subr.mxu0 0.0
  %1053 = vmatpush1.msra.mxu0 0.0
  %1054 = vmatprep.subr.mxu0 0.0
  %1055 = vmatpush1.msra.mxu0 0.0
  %1056 = vmatprep.mubr.f32.mxu0 0.0
  %1057 = vmatmul.mubr.f32.gmra.mrb[0].mxu0 %v914
  %v1058 = vpop.f32.mrb[0].mxu0
  %v1059 = vadd.f32 %v78, %v1058
  %v1060 = vpop.f32.mrb[0].mxu0
  %1061 = vdwg.mxu0
  %v1062 = vadd.f32 %v918, %v988
  %v1063 = vxor.u32 %v1062, 2147483648
  %v1064 = vmul.f32 %v1063, 1.442695
  %v1065 = vpow.pop %v1064
  %v1066 = vadd.f32 %v1065, 1.0
  %v1067 = vrcp.pop %v1066
  %v1068 = vmul.f32 1.0, %v1067
  %v1069 = vadd.f32 %v919, %v990
  %v1070 = vxor.u32 %v1069, 2147483648
  %v1071 = vmul.f32 %v1070, 1.442695
  %v1072 = vpow.pop %v1071
  %v1073 = vadd.f32 %v1072, 1.0
  %v1074 = vrcp.pop %v1073
  %v1075 = vmul.f32 1.0, %v1074
  %v1076 = vmul.f32 %v1068, %v1059
  %v1077 = vadd.f32 %v920, %v1076
  %v1078 = vtanh.pop %v1077
  %v1079 = vsub.f32 1.0, %v1075
  %v1080 = vmul.f32 %v1079, %v1078
  %v1081 = vmul.f32 %v1075, %v914
  %v1082 = vadd.f32 %v1080, %v1081
  %s1083 = scalar_lea.vmem [#allocation2], 40
  %1084 = vst [vmem:[%s1083] sm:$0xff] %v1082
  %s1085 = scalar_lea.vmem %s0, 144
  %v1086 = vld [vmem:[%s1085] sm:$0xff]
  %v1087 = vld [vmem:[%s1085 + $0x8] sm:$0xff]
  %v1088 = vld [vmem:[%s1085 + $0x10] sm:$0xff]
  %1089 = vmatprep.subr.mxu0 %v15
  %1090 = vmatpush1.msra.mxu0 %v14
  %1091 = vmatprep.subr.mxu0 %v18
  %1092 = vmatpush1.msra.mxu0 %v17
  %1093 = vmatprep.subr.mxu0 %v21
  %1094 = vmatpush1.msra.mxu0 %v20
  %1095 = vmatprep.subr.mxu0 %v24
  %1096 = vmatpush1.msra.mxu0 %v23
  %1097 = vmatprep.subr.mxu0 %v27
  %1098 = vmatpush1.msra.mxu0 %v26
  %1099 = vmatprep.subr.mxu0 %v30
  %1100 = vmatpush1.msra.mxu0 %v29
  %1101 = vmatprep.subr.mxu0 %v33
  %1102 = vmatpush1.msra.mxu0 %v32
  %1103 = vmatprep.subr.mxu0 %v36
  %1104 = vmatpush1.msra.mxu0 %v35
  %1105 = vmatprep.subr.mxu0 %v39
  %1106 = vmatpush1.msra.mxu0 %v38
  %1107 = vmatprep.subr.mxu0 %v42
  %1108 = vmatpush1.msra.mxu0 %v41
  %1109 = vmatprep.subr.mxu0 %v45
  %1110 = vmatpush1.msra.mxu0 %v44
  %1111 = vmatprep.subr.mxu0 %v48
  %1112 = vmatpush1.msra.mxu0 %v47
  %1113 = vmatprep.subr.mxu0 %v51
  %1114 = vmatpush1.msra.mxu0 %v50
  %1115 = vmatprep.subr.mxu0 %v54
  %1116 = vmatpush1.msra.mxu0 %v53
  %1117 = vmatprep.subr.mxu0 %v57
  %1118 = vmatpush1.msra.mxu0 %v56
  %1119 = vmatprep.subr.mxu0 %v60
  %1120 = vmatpush1.msra.mxu0 %v59
  %1121 = vmatprep.subr.mxu0 0.0
  %1122 = vmatpush1.msra.mxu0 0.0
  %1123 = vmatprep.subr.mxu0 0.0
  %1124 = vmatpush1.msra.mxu0 0.0
  %1125 = vmatprep.subr.mxu0 0.0
  %1126 = vmatpush1.msra.mxu0 0.0
  %1127 = vmatprep.subr.mxu0 0.0
  %1128 = vmatpush1.msra.mxu0 0.0
  %1129 = vmatprep.subr.mxu0 0.0
  %1130 = vmatpush1.msra.mxu0 0.0
  %1131 = vmatprep.subr.mxu0 0.0
  %1132 = vmatpush1.msra.mxu0 0.0
  %1133 = vmatprep.subr.mxu0 0.0
  %1134 = vmatpush1.msra.mxu0 0.0
  %1135 = vmatprep.subr.mxu0 0.0
  %1136 = vmatpush1.msra.mxu0 0.0
  %1137 = vmatprep.subr.mxu0 0.0
  %1138 = vmatpush1.msra.mxu0 0.0
  %1139 = vmatprep.subr.mxu0 0.0
  %1140 = vmatpush1.msra.mxu0 0.0
  %1141 = vmatprep.subr.mxu0 0.0
  %1142 = vmatpush1.msra.mxu0 0.0
  %1143 = vmatprep.subr.mxu0 0.0
  %1144 = vmatpush1.msra.mxu0 0.0
  %1145 = vmatprep.subr.mxu0 0.0
  %1146 = vmatpush1.msra.mxu0 0.0
  %1147 = vmatprep.subr.mxu0 0.0
  %1148 = vmatpush1.msra.mxu0 0.0
  %1149 = vmatprep.subr.mxu0 0.0
  %1150 = vmatpush1.msra.mxu0 0.0
  %1151 = vmatprep.subr.mxu0 0.0
  %1152 = vmatpush1.msra.mxu0 0.0
  %1153 = vmatprep.mubr.f32.mxu0 0.0
  %1154 = vmatmul.mubr.f32.gmra.mrb[0].mxu0 %v1082
  %v1155 = vpop.f32.mrb[0].mxu0
  %v1156 = vadd.f32 %v70, %v1155
  %v1157 = vpop.f32.mrb[0].mxu0
  %v1158 = vadd.f32 %v74, %v1157
  %1159 = vdwg.mxu0
  %1160 = vmatprep.subr.mxu0 0.0
  %1161 = vmatpush1.msra.mxu0 %v16
  %1162 = vmatprep.subr.mxu0 0.0
  %1163 = vmatpush1.msra.mxu0 %v19
  %1164 = vmatprep.subr.mxu0 0.0
  %1165 = vmatpush1.msra.mxu0 %v22
  %1166 = vmatprep.subr.mxu0 0.0
  %1167 = vmatpush1.msra.mxu0 %v25
  %1168 = vmatprep.subr.mxu0 0.0
  %1169 = vmatpush1.msra.mxu0 %v28
  %1170 = vmatprep.subr.mxu0 0.0
  %1171 = vmatpush1.msra.mxu0 %v31
  %1172 = vmatprep.subr.mxu0 0.0
  %1173 = vmatpush1.msra.mxu0 %v34
  %1174 = vmatprep.subr.mxu0 0.0
  %1175 = vmatpush1.msra.mxu0 %v37
  %1176 = vmatprep.subr.mxu0 0.0
  %1177 = vmatpush1.msra.mxu0 %v40
  %1178 = vmatprep.subr.mxu0 0.0
  %1179 = vmatpush1.msra.mxu0 %v43
  %1180 = vmatprep.subr.mxu0 0.0
  %1181 = vmatpush1.msra.mxu0 %v46
  %1182 = vmatprep.subr.mxu0 0.0
  %1183 = vmatpush1.msra.mxu0 %v49
  %1184 = vmatprep.subr.mxu0 0.0
  %1185 = vmatpush1.msra.mxu0 %v52
  %1186 = vmatprep.subr.mxu0 0.0
  %1187 = vmatpush1.msra.mxu0 %v55
  %1188 = vmatprep.subr.mxu0 0.0
  %1189 = vmatpush1.msra.mxu0 %v58
  %1190 = vmatprep.subr.mxu0 0.0
  %1191 = vmatpush1.msra.mxu0 %v61
  %1192 = vmatprep.subr.mxu0 0.0
  %1193 = vmatpush1.msra.mxu0 0.0
  %1194 = vmatprep.subr.mxu0 0.0
  %1195 = vmatpush1.msra.mxu0 0.0
  %1196 = vmatprep.subr.mxu0 0.0
  %1197 = vmatpush1.msra.mxu0 0.0
  %1198 = vmatprep.subr.mxu0 0.0
  %1199 = vmatpush1.msra.mxu0 0.0
  %1200 = vmatprep.subr.mxu0 0.0
  %1201 = vmatpush1.msra.mxu0 0.0
  %1202 = vmatprep.subr.mxu0 0.0
  %1203 = vmatpush1.msra.mxu0 0.0
  %1204 = vmatprep.subr.mxu0 0.0
  %1205 = vmatpush1.msra.mxu0 0.0
  %1206 = vmatprep.subr.mxu0 0.0
  %1207 = vmatpush1.msra.mxu0 0.0
  %1208 = vmatprep.subr.mxu0 0.0
  %1209 = vmatpush1.msra.mxu0 0.0
  %1210 = vmatprep.subr.mxu0 0.0
  %1211 = vmatpush1.msra.mxu0 0.0
  %1212 = vmatprep.subr.mxu0 0.0
  %1213 = vmatpush1.msra.mxu0 0.0
  %1214 = vmatprep.subr.mxu0 0.0
  %1215 = vmatpush1.msra.mxu0 0.0
  %1216 = vmatprep.subr.mxu0 0.0
  %1217 = vmatpush1.msra.mxu0 0.0
  %1218 = vmatprep.subr.mxu0 0.0
  %1219 = vmatpush1.msra.mxu0 0.0
  %1220 = vmatprep.subr.mxu0 0.0
  %1221 = vmatpush1.msra.mxu0 0.0
  %1222 = vmatprep.subr.mxu0 0.0
  %1223 = vmatpush1.msra.mxu0 0.0
  %1224 = vmatprep.mubr.f32.mxu0 0.0
  %1225 = vmatmul.mubr.f32.gmra.mrb[0].mxu0 %v1082
  %v1226 = vpop.f32.mrb[0].mxu0
  %v1227 = vadd.f32 %v78, %v1226
  %v1228 = vpop.f32.mrb[0].mxu0
  %1229 = vdwg.mxu0
  %v1230 = vadd.f32 %v1086, %v1156
  %v1231 = vxor.u32 %v1230, 2147483648
  %v1232 = vmul.f32 %v1231, 1.442695
  %v1233 = vpow.pop %v1232
  %v1234 = vadd.f32 %v1233, 1.0
  %v1235 = vrcp.pop %v1234
  %v1236 = vmul.f32 1.0, %v1235
  %v1237 = vadd.f32 %v1087, %v1158
  %v1238 = vxor.u32 %v1237, 2147483648
  %v1239 = vmul.f32 %v1238, 1.442695
  %v1240 = vpow.pop %v1239
  %v1241 = vadd.f32 %v1240, 1.0
  %v1242 = vrcp.pop %v1241
  %v1243 = vmul.f32 1.0, %v1242
  %v1244 = vmul.f32 %v1236, %v1227
  %v1245 = vadd.f32 %v1088, %v1244
  %v1246 = vtanh.pop %v1245
  %v1247 = vsub.f32 1.0, %v1243
  %v1248 = vmul.f32 %v1247, %v1246
  %v1249 = vmul.f32 %v1243, %v1082
  %v1250 = vadd.f32 %v1248, %v1249
  %s1251 = scalar_lea.vmem [#allocation2], 48
  %1252 = vst [vmem:[%s1251] sm:$0xff] %v1250
  %s1253 = scalar_lea.vmem %s0, 168
  %v1254 = vld [vmem:[%s1253] sm:$0xff]
  %v1255 = vld [vmem:[%s1253 + $0x8] sm:$0xff]
  %v1256 = vld [vmem:[%s1253 + $0x10] sm:$0xff]
  %1257 = vmatprep.subr.mxu0 %v15
  %1258 = vmatpush1.msra.mxu0 %v14
  %1259 = vmatprep.subr.mxu0 %v18
  %1260 = vmatpush1.msra.mxu0 %v17
  %1261 = vmatprep.subr.mxu0 %v21
  %1262 = vmatpush1.msra.mxu0 %v20
  %1263 = vmatprep.subr.mxu0 %v24
  %1264 = vmatpush1.msra.mxu0 %v23
  %1265 = vmatprep.subr.mxu0 %v27
  %1266 = vmatpush1.msra.mxu0 %v26
  %1267 = vmatprep.subr.mxu0 %v30
  %1268 = vmatpush1.msra.mxu0 %v29
  %1269 = vmatprep.subr.mxu0 %v33
  %1270 = vmatpush1.msra.mxu0 %v32
  %1271 = vmatprep.subr.mxu0 %v36
  %1272 = vmatpush1.msra.mxu0 %v35
  %1273 = vmatprep.subr.mxu0 %v39
  %1274 = vmatpush1.msra.mxu0 %v38
  %1275 = vmatprep.subr.mxu0 %v42
  %1276 = vmatpush1.msra.mxu0 %v41
  %1277 = vmatprep.subr.mxu0 %v45
  %1278 = vmatpush1.msra.mxu0 %v44
  %1279 = vmatprep.subr.mxu0 %v48
  %1280 = vmatpush1.msra.mxu0 %v47
  %1281 = vmatprep.subr.mxu0 %v51
  %1282 = vmatpush1.msra.mxu0 %v50
  %1283 = vmatprep.subr.mxu0 %v54
  %1284 = vmatpush1.msra.mxu0 %v53
  %1285 = vmatprep.subr.mxu0 %v57
  %1286 = vmatpush1.msra.mxu0 %v56
  %1287 = vmatprep.subr.mxu0 %v60
  %1288 = vmatpush1.msra.mxu0 %v59
  %1289 = vmatprep.subr.mxu0 0.0
  %1290 = vmatpush1.msra.mxu0 0.0
  %1291 = vmatprep.subr.mxu0 0.0
  %1292 = vmatpush1.msra.mxu0 0.0
  %1293 = vmatprep.subr.mxu0 0.0
  %1294 = vmatpush1.msra.mxu0 0.0
  %1295 = vmatprep.subr.mxu0 0.0
  %1296 = vmatpush1.msra.mxu0 0.0
  %1297 = vmatprep.subr.mxu0 0.0
  %1298 = vmatpush1.msra.mxu0 0.0
  %1299 = vmatprep.subr.mxu0 0.0
  %1300 = vmatpush1.msra.mxu0 0.0
  %1301 = vmatprep.subr.mxu0 0.0
  %1302 = vmatpush1.msra.mxu0 0.0
  %1303 = vmatprep.subr.mxu0 0.0
  %1304 = vmatpush1.msra.mxu0 0.0
  %1305 = vmatprep.subr.mxu0 0.0
  %1306 = vmatpush1.msra.mxu0 0.0
  %1307 = vmatprep.subr.mxu0 0.0
  %1308 = vmatpush1.msra.mxu0 0.0
  %1309 = vmatprep.subr.mxu0 0.0
  %1310 = vmatpush1.msra.mxu0 0.0
  %1311 = vmatprep.subr.mxu0 0.0
  %1312 = vmatpush1.msra.mxu0 0.0
  %1313 = vmatprep.subr.mxu0 0.0
  %1314 = vmatpush1.msra.mxu0 0.0
  %1315 = vmatprep.subr.mxu0 0.0
  %1316 = vmatpush1.msra.mxu0 0.0
  %1317 = vmatprep.subr.mxu0 0.0
  %1318 = vmatpush1.msra.mxu0 0.0
  %1319 = vmatprep.subr.mxu0 0.0
  %1320 = vmatpush1.msra.mxu0 0.0
  %1321 = vmatprep.mubr.f32.mxu0 0.0
  %1322 = vmatmul.mubr.f32.gmra.mrb[0].mxu0 %v1250
  %v1323 = vpop.f32.mrb[0].mxu0
  %v1324 = vadd.f32 %v70, %v1323
  %v1325 = vpop.f32.mrb[0].mxu0
  %v1326 = vadd.f32 %v74, %v1325
  %1327 = vdwg.mxu0
  %1328 = vmatprep.subr.mxu0 0.0
  %1329 = vmatpush1.msra.mxu0 %v16
  %1330 = vmatprep.subr.mxu0 0.0
  %1331 = vmatpush1.msra.mxu0 %v19
  %1332 = vmatprep.subr.mxu0 0.0
  %1333 = vmatpush1.msra.mxu0 %v22
  %1334 = vmatprep.subr.mxu0 0.0
  %1335 = vmatpush1.msra.mxu0 %v25
  %1336 = vmatprep.subr.mxu0 0.0
  %1337 = vmatpush1.msra.mxu0 %v28
  %1338 = vmatprep.subr.mxu0 0.0
  %1339 = vmatpush1.msra.mxu0 %v31
  %1340 = vmatprep.subr.mxu0 0.0
  %1341 = vmatpush1.msra.mxu0 %v34
  %1342 = vmatprep.subr.mxu0 0.0
  %1343 = vmatpush1.msra.mxu0 %v37
  %1344 = vmatprep.subr.mxu0 0.0
  %1345 = vmatpush1.msra.mxu0 %v40
  %1346 = vmatprep.subr.mxu0 0.0
  %1347 = vmatpush1.msra.mxu0 %v43
  %1348 = vmatprep.subr.mxu0 0.0
  %1349 = vmatpush1.msra.mxu0 %v46
  %1350 = vmatprep.subr.mxu0 0.0
  %1351 = vmatpush1.msra.mxu0 %v49
  %1352 = vmatprep.subr.mxu0 0.0
  %1353 = vmatpush1.msra.mxu0 %v52
  %1354 = vmatprep.subr.mxu0 0.0
  %1355 = vmatpush1.msra.mxu0 %v55
  %1356 = vmatprep.subr.mxu0 0.0
  %1357 = vmatpush1.msra.mxu0 %v58
  %1358 = vmatprep.subr.mxu0 0.0
  %1359 = vmatpush1.msra.mxu0 %v61
  %1360 = vmatprep.subr.mxu0 0.0
  %1361 = vmatpush1.msra.mxu0 0.0
  %1362 = vmatprep.subr.mxu0 0.0
  %1363 = vmatpush1.msra.mxu0 0.0
  %1364 = vmatprep.subr.mxu0 0.0
  %1365 = vmatpush1.msra.mxu0 0.0
  %1366 = vmatprep.subr.mxu0 0.0
  %1367 = vmatpush1.msra.mxu0 0.0
  %1368 = vmatprep.subr.mxu0 0.0
  %1369 = vmatpush1.msra.mxu0 0.0
  %1370 = vmatprep.subr.mxu0 0.0
  %1371 = vmatpush1.msra.mxu0 0.0
  %1372 = vmatprep.subr.mxu0 0.0
  %1373 = vmatpush1.msra.mxu0 0.0
  %1374 = vmatprep.subr.mxu0 0.0
  %1375 = vmatpush1.msra.mxu0 0.0
  %1376 = vmatprep.subr.mxu0 0.0
  %1377 = vmatpush1.msra.mxu0 0.0
  %1378 = vmatprep.subr.mxu0 0.0
  %1379 = vmatpush1.msra.mxu0 0.0
  %1380 = vmatprep.subr.mxu0 0.0
  %1381 = vmatpush1.msra.mxu0 0.0
  %1382 = vmatprep.subr.mxu0 0.0
  %1383 = vmatpush1.msra.mxu0 0.0
  %1384 = vmatprep.subr.mxu0 0.0
  %1385 = vmatpush1.msra.mxu0 0.0
  %1386 = vmatprep.subr.mxu0 0.0
  %1387 = vmatpush1.msra.mxu0 0.0
  %1388 = vmatprep.subr.mxu0 0.0
  %1389 = vmatpush1.msra.mxu0 0.0
  %1390 = vmatprep.subr.mxu0 0.0
  %1391 = vmatpush1.msra.mxu0 0.0
  %1392 = vmatprep.mubr.f32.mxu0 0.0
  %1393 = vmatmul.mubr.f32.gmra.mrb[0].mxu0 %v1250
  %v1394 = vpop.f32.mrb[0].mxu0
  %v1395 = vadd.f32 %v78, %v1394
  %v1396 = vpop.f32.mrb[0].mxu0
  %1397 = vdwg.mxu0
  %v1398 = vadd.f32 %v1254, %v1324
  %v1399 = vxor.u32 %v1398, 2147483648
  %v1400 = vmul.f32 %v1399, 1.442695
  %v1401 = vpow.pop %v1400
  %v1402 = vadd.f32 %v1401, 1.0
  %v1403 = vrcp.pop %v1402
  %v1404 = vmul.f32 1.0, %v1403
  %v1405 = vadd.f32 %v1255, %v1326
  %v1406 = vxor.u32 %v1405, 2147483648
  %v1407 = vmul.f32 %v1406, 1.442695
  %v1408 = vpow.pop %v1407
  %v1409 = vadd.f32 %v1408, 1.0
  %v1410 = vrcp.pop %v1409
  %v1411 = vmul.f32 1.0, %v1410
  %v1412 = vmul.f32 %v1404, %v1395
  %v1413 = vadd.f32 %v1256, %v1412
  %v1414 = vtanh.pop %v1413
  %v1415 = vsub.f32 1.0, %v1411
  %v1416 = vmul.f32 %v1415, %v1414
  %v1417 = vmul.f32 %v1411, %v1250
  %v1418 = vadd.f32 %v1416, %v1417
  %s1419 = scalar_lea.vmem [#allocation2], 56
  %1420 = vst [vmem:[%s1419] sm:$0xff] %v1418
  %v1421 = vld [vmem:[%s915] sm:$0xff]
  %v1422 = vld [vmem:[%s915 + $0x8] sm:$0xff]
  %v1423 = vld [vmem:[%s915 + $0x10] sm:$0xff]
  %v1424 = vld [vmem:[%s915 + $0x18] sm:$0xff]
  %1425 = vst [vmem:[%s3] sm:$0xff] %v1421
  %1426 = vst [vmem:[%s3 + $0x8] sm:$0xff] %v1422
  %1427 = vst [vmem:[%s3 + $0x10] sm:$0xff] %v1423
  %1428 = vst [vmem:[%s3 + $0x18] sm:$0xff] %v1424
  // Predicated region
  $region14: #{gru4rec_forward.4} parent=0 // pred_check
    _
  $region15: #{gru4rec_forward.4} parent=0 // pred_check_branch
    %1430 = sbr.rel (0) target = $region17
  $region16: #{gru4rec_forward.4} parent=0 // pred_region
    _
  $region17: #{gru4rec_forward.4} parent=0 // pred_fallthru
    _
  // Predicated region
  $region18: #{gru4rec_forward.4} parent=0 // pred_check
    _
  $region19: #{gru4rec_forward.4} parent=0 // pred_check_branch
    %1432 = sbr.rel (0) target = $region21
  $region20: #{gru4rec_forward.4} parent=0 // pred_region
    _
  $region21: #{gru4rec_forward.4} parent=0 // pred_fallthru
    _

</llo_original>
